<compile_context>
chip_gen: v6e
topology: v6e:2x2x1
jax: 0.10.0
libtpu: 0.0.40
codegen_flags: <defaults>
</compile_context>

<pallas_src>
import jax
import jax.numpy as jnp
from jax import lax
from jax.experimental import pallas as pl
from jax.experimental.pallas import tpu as pltpu


def _round_up(n, m):
    return ((n + m - 1) // m) * m


def _weight_norm(v, g):
    """PyTorch weight_norm (dim=0): w = g * v / ||v||, norm over (in, K)."""
    v = v.astype(jnp.float32)
    norm = jnp.sqrt(jnp.sum(v * v, axis=(1, 2), keepdims=True))
    return g.reshape(-1, 1, 1).astype(jnp.float32) * v / norm


def _make_wn_kernel(hidden, kernel_size, dilation_rate, n_layers, PL, Tp, has_g):
    """Fully fused WN forward for one batch element (all layers unrolled)."""
    H = hidden
    K = kernel_size

    def kernel(*refs):
        it = iter(refs)
        x_ref = next(it)                      # (1, H, PL + Tp + PL) halo-padded x
        mask_ref = next(it)                   # (1, 1, Tp)
        cond_ref = next(it) if has_g else None  # (1, 2H*L, Tp) precomputed cond
        w_in_ref = next(it)                   # (L, 2H, K*H) bf16
        b_in_ref = next(it)                   # (L, 2H, 1)  f32
        w_rs_ref = next(it)                   # (L, 2H, H)  bf16 (last layer zero-padded)
        b_rs_ref = next(it)                   # (L, 2H, 1)  f32 (last layer zero-padded)
        out_ref = next(it)                    # (1, H, Tp)
        x_sc = next(it)                       # VMEM scratch (H, PL + Tp + PL) f32

        # Residual x (with its zero conv halo) stays resident in VMEM across
        # all layers; the halo region is never written so it stays zero.
        x_sc[...] = x_ref[0].astype(jnp.float32)
        m = mask_ref[0].astype(jnp.float32)                 # (1, Tp)
        out_acc = jnp.zeros((H, Tp), jnp.float32)           # skip accumulator

        for i in range(n_layers):
            d = dilation_rate ** i
            pad = d * (K - 1) // 2

            # K shifted taps -> one deep-contraction MXU matmul (depth K*H).
            taps = jnp.concatenate(
                [x_sc[:, PL - pad + j * d: PL - pad + j * d + Tp]
                 .astype(jnp.bfloat16) for j in range(K)],
                axis=0)                                      # (K*H, Tp) bf16
            x_in = jnp.dot(w_in_ref[i], taps,
                           preferred_element_type=jnp.float32)   # (2H, Tp) f32
            x_in = x_in + b_in_ref[i]
            if has_g:
                x_in = x_in + cond_ref[0, i * 2 * H:(i + 1) * 2 * H, :] \
                    .astype(jnp.float32)

            # fused_add_tanh_sigmoid_multiply: tanh on EUP; sigmoid as
            # exp (EUP) + approximate reciprocal (EUP) -> no VALU divide.
            t_act = jnp.tanh(x_in[:H, :])
            s_act = pl.reciprocal(1.0 + jnp.exp(-x_in[H:, :]), approx=True)
            acts = (t_act * s_act).astype(jnp.bfloat16)      # (H, Tp)

            rs = jnp.dot(w_rs_ref[i], acts,
                         preferred_element_type=jnp.float32)     # (2H, Tp) f32
            rs = rs + b_rs_ref[i]

            if i < n_layers - 1:
                # residual update (lane-aligned store) + skip accumulation
                x_sc[:, PL:PL + Tp] = (x_sc[:, PL:PL + Tp] + rs[:H, :]) * m
                out_acc = out_acc + rs[H:, :]
            else:
                out_acc = out_acc + rs[:H, :]

        out_ref[0] = (out_acc * m).astype(out_ref.dtype)

    return kernel


def wn_forward(x, x_mask, g, params, *, hidden_channels, kernel_size,
               dilation_rate, n_layers, gin_channels=0):
    """WN forward. x: (B, H, T); x_mask: (B, 1, T) or None; g: (B, gin, T) or None."""
    B, H, T = x.shape
    assert H == hidden_channels and kernel_size % 2 == 1 and H % 2 == 0
    dtype = x.dtype
    L = n_layers
    K = kernel_size

    # Lane-dense time axis (multiple of 128) + single lane-aligned zero halo
    # large enough for the most-dilated layer.
    Tp = max(128, _round_up(T, 128))
    pad_max = (dilation_rate ** (L - 1)) * (K - 1) // 2
    PL = max(128, _round_up(pad_max, 128))
    Ltot = PL + Tp + PL

    xw = jnp.zeros((B, H, Ltot), dtype).at[:, :, PL:PL + T].set(x)

    if x_mask is None:
        mask = jnp.ones((B, 1, T), jnp.float32)
    else:
        mask = x_mask.astype(jnp.float32)
    maskw = jnp.pad(mask, ((0, 0), (0, 0), (0, Tp - T)))     # zeros in padded tail

    # ---- parameter preprocessing (weight norm applied once; bf16 MXU operands)
    w_in_list, b_in_list, w_rs_list, b_rs_list = [], [], [], []
    for i in range(L):
        w_in = _weight_norm(params["in_v"][i], params["in_g"][i])   # (2H, H, K)
        # flatten taps into the contraction dim: column index = j*H + h
        w_in_flat = jnp.transpose(w_in, (0, 2, 1)).reshape(2 * H, K * H)
        w_in_list.append(w_in_flat)
        b_in_list.append(params["in_b"][i].astype(jnp.float32).reshape(2 * H, 1))

        w_rs = _weight_norm(params["rs_v"][i], params["rs_g"][i])[:, :, 0]
        b_rs = params["rs_b"][i].astype(jnp.float32).reshape(-1, 1)
        if i == L - 1:  # pad the (H -> H) last layer up to 2H rows with zeros
            w_rs = jnp.concatenate([w_rs, jnp.zeros((H, H), jnp.float32)], axis=0)
            b_rs = jnp.concatenate([b_rs, jnp.zeros((H, 1), jnp.float32)], axis=0)
        w_rs_list.append(w_rs)
        b_rs_list.append(b_rs)

    w_in_stack = jnp.stack(w_in_list).astype(jnp.bfloat16)   # (L, 2H, K*H)
    b_in_stack = jnp.stack(b_in_list)                        # (L, 2H, 1) f32
    w_rs_stack = jnp.stack(w_rs_list).astype(jnp.bfloat16)   # (L, 2H, H)
    b_rs_stack = jnp.stack(b_rs_list)                        # (L, 2H, 1) f32

    # ---- conditioning projection hoisted out of the kernel (one matmul total)
    has_g = g is not None
    if has_g:
        w_cond = _weight_norm(params["cond_v"], params["cond_g"])[:, :, 0]
        cond = jnp.einsum("oc,bct->bot", w_cond, g.astype(jnp.float32),
                          precision=lax.Precision.HIGHEST)
        cond = cond + params["cond_b"].astype(jnp.float32).reshape(1, -1, 1)
        condw = jnp.pad(cond, ((0, 0), (0, 0), (0, Tp - T)))  # (B, 2H*L, Tp)

    inputs = [xw, maskw]
    in_specs = [
        pl.BlockSpec((1, H, Ltot), lambda b: (b, 0, 0)),
        pl.BlockSpec((1, 1, Tp), lambda b: (b, 0, 0)),
    ]
    if has_g:
        inputs.append(condw)
        in_specs.append(pl.BlockSpec((1, 2 * H * L, Tp), lambda b: (b, 0, 0)))
    inputs += [w_in_stack, b_in_stack, w_rs_stack, b_rs_stack]
    in_specs += [
        pl.BlockSpec((L, 2 * H, K * H), lambda b: (0, 0, 0)),
        pl.BlockSpec((L, 2 * H, 1), lambda b: (0, 0, 0)),
        pl.BlockSpec((L, 2 * H, H), lambda b: (0, 0, 0)),
        pl.BlockSpec((L, 2 * H, 1), lambda b: (0, 0, 0)),
    ]

    kernel = _make_wn_kernel(H, K, dilation_rate, L, PL, Tp, has_g)
    out = pl.pallas_call(
        kernel,
        out_shape=jax.ShapeDtypeStruct((B, H, Tp), dtype),
        grid=(B,),
        in_specs=in_specs,
        out_specs=pl.BlockSpec((1, H, Tp), lambda b: (b, 0, 0)),
        scratch_shapes=[pltpu.VMEM((H, Ltot), jnp.float32)],
        compiler_params=pltpu.CompilerParams(
            dimension_semantics=("parallel",),
            vmem_limit_bytes=32 * 1024 * 1024,
        ),
    )(*inputs)

    return out[:, :, :T]


wn_forward_jit = jax.jit(
    wn_forward,
    static_argnames=("hidden_channels", "kernel_size", "dilation_rate",
                     "n_layers", "gin_channels"),
)


# ----------------------- pure-JAX (XLA) reference ---------------------------

def wn_reference(x, x_mask, g, params, *, hidden_channels, kernel_size,
                 dilation_rate, n_layers, gin_channels=0):
    H = hidden_channels
    B, _, T = x.shape
    if x_mask is None:
        x_mask = jnp.ones((B, 1, T), jnp.float32)
    x_mask = x_mask.astype(jnp.float32)
    prec = lax.Precision.HIGHEST
    dn = ("NCH", "OIH", "NCH")

    xf = x.astype(jnp.float32)
    output = jnp.zeros((B, H, T), jnp.float32)

    if g is not None:
        w_cond = _weight_norm(params["cond_v"], params["cond_g"])
        g_all = lax.conv_general_dilated(
            g.astype(jnp.float32), w_cond, (1,), [(0, 0)],
            dimension_numbers=dn, precision=prec)
        g_all = g_all + params["cond_b"].reshape(1, -1, 1)

    for i in range(n_layers):
        d = dilation_rate ** i
        pad = (kernel_size * d - d) // 2
        w_in = _weight_norm(params["in_v"][i], params["in_g"][i])
        x_in = lax.conv_general_dilated(
            xf, w_in, (1,), [(pad, pad)], rhs_dilation=(d,),
            dimension_numbers=dn, precision=prec)
        x_in = x_in + params["in_b"][i].reshape(1, -1, 1)
        if g is not None:
            g_l = g_all[:, i * 2 * H:(i + 1) * 2 * H, :]
        else:
            g_l = jnp.zeros_like(x_in)
        in_act = x_in + g_l
        acts = jnp.tanh(in_act[:, :H]) * jax.nn.sigmoid(in_act[:, H:])
        w_rs = _weight_norm(params["rs_v"][i], params["rs_g"][i])
        rs = lax.conv_general_dilated(
            acts, w_rs, (1,), [(0, 0)], dimension_numbers=dn, precision=prec)
        rs = rs + params["rs_b"][i].reshape(1, -1, 1)
        if i < n_layers - 1:
            xf = (xf + rs[:, :H]) * x_mask
            output = output + rs[:, H:]
        else:
            output = output + rs
    return output * x_mask


# ------------------------------ parameters ----------------------------------

def init_params(key, hidden, kernel_size, dilation_rate, n_layers, gin_channels):
    H = hidden
    keys = list(jax.random.split(key, 6 * n_layers + 3))

    def normal(shape, scale=1.0):
        return scale * jax.random.normal(keys.pop(), shape, dtype=jnp.float32)

    params = {"in_v": [], "in_g": [], "in_b": [],
              "rs_v": [], "rs_g": [], "rs_b": []}
    for i in range(n_layers):
        params["in_v"].append(normal((2 * H, H, kernel_size)))
        params["in_g"].append(1.0 + 0.1 * normal((2 * H,)))
        params["in_b"].append(0.1 * normal((2 * H,)))
        rs_ch = 2 * H if i < n_layers - 1 else H
        params["rs_v"].append(normal((rs_ch, H, 1)))
        params["rs_g"].append(1.0 + 0.1 * normal((rs_ch,)))
        params["rs_b"].append(0.1 * normal((rs_ch,)))
    if gin_channels:
        params["cond_v"] = normal((2 * H * n_layers, gin_channels, 1))
        params["cond_g"] = 1.0 + 0.1 * normal((2 * H * n_layers,))
        params["cond_b"] = 0.1 * normal((2 * H * n_layers,))
    return params


if __name__ == "__main__":
    key = jax.random.PRNGKey(0)
    B, hidden, T = 2, 32, 100
    kernel_size, dilation_rate, n_layers = 3, 2, 3

    k_x, k_g, k_p0, k_p1 = jax.random.split(key, 4)
    x = jax.random.normal(k_x, (B, hidden, T), dtype=jnp.float32)
    lengths = jnp.array([T, T - 23], dtype=jnp.int32)
    x_mask = (jnp.arange(T)[None, None, :] < lengths[:, None, None]).astype(jnp.float32)

    cfg = dict(hidden_channels=hidden, kernel_size=kernel_size,
               dilation_rate=dilation_rate, n_layers=n_layers)

    # Tolerance covers bf16 MXU operands + f32 accumulation vs the f32
    # HIGHEST-precision XLA reference, compounded over n_layers residuals.
    ATOL = RTOL = 5e-2

    # Case 1: no conditioning (gin_channels = 0, module default).
    params0 = init_params(k_p0, hidden, kernel_size, dilation_rate, n_layers, 0)
    y0 = wn_forward_jit(x, x_mask, None, params0, gin_channels=0, **cfg)
    y0 = jax.block_until_ready(y0)
    y0_ref = wn_reference(x, x_mask, None, params0, gin_channels=0, **cfg)
    assert y0.shape == (B, hidden, T)
    assert jnp.allclose(y0, y0_ref, atol=ATOL, rtol=RTOL), \
        f"max err {float(jnp.max(jnp.abs(y0 - y0_ref)))}"

    # Case 2: with global conditioning (gin_channels = 4).
    gin = 4
    params1 = init_params(k_p1, hidden, kernel_size, dilation_rate, n_layers, gin)
    g = jax.random.normal(k_g, (B, gin, T), dtype=jnp.float32)
    y1 = wn_forward_jit(x, x_mask, g, params1, gin_channels=gin, **cfg)
    y1 = jax.block_until_ready(y1)
    y1_ref = wn_reference(x, x_mask, g, params1, gin_channels=gin, **cfg)
    assert jnp.allclose(y1, y1_ref, atol=ATOL, rtol=RTOL), \
        f"max err {float(jnp.max(jnp.abs(y1 - y1_ref)))}"

    print("KERNEL_OK")
</pallas_src>

<mosaic_0001>
module attributes {stable_mosaic.version = 11 : i64} {
  func.func @kernel(%arg0: i32, %arg1: memref<1x32x384xf32, #tpu.memory_space<vmem>>, %arg2: memref<1x1x128xf32, #tpu.memory_space<vmem>>, %arg3: memref<3x64x96xbf16, #tpu.memory_space<vmem>>, %arg4: memref<3x64x1xf32, #tpu.memory_space<vmem>>, %arg5: memref<3x64x32xbf16, #tpu.memory_space<vmem>>, %arg6: memref<3x64x1xf32, #tpu.memory_space<vmem>>, %arg7: memref<1x32x128xf32, #tpu.memory_space<vmem>>, %arg8: memref<32x384xf32, #tpu.memory_space<vmem>>) attributes {dimension_semantics = [#tpu.dimension_semantics<parallel>], iteration_bounds = array<i64: 2>, scalar_prefetch = 0 : i64, scratch_operands = 1 : i64, tpu.core_type = #tpu.core_type<tc>, window_params = [{transform_indices = @transform_0, window_bounds = array<i64: 1, 32, 384>}, {transform_indices = @transform_1, window_bounds = array<i64: 1, 1, 128>}, {pipeline_mode = #tpu.pipeline_mode<synchronous>, transform_indices = @transform_2, window_bounds = array<i64: 3, 64, 96>}, {pipeline_mode = #tpu.pipeline_mode<synchronous>, transform_indices = @transform_3, window_bounds = array<i64: 3, 64, 1>}, {pipeline_mode = #tpu.pipeline_mode<synchronous>, transform_indices = @transform_4, window_bounds = array<i64: 3, 64, 32>}, {pipeline_mode = #tpu.pipeline_mode<synchronous>, transform_indices = @transform_5, window_bounds = array<i64: 3, 64, 1>}, {transform_indices = @transform_6, window_bounds = array<i64: 1, 32, 128>}]} {
    %c0 = arith.constant 0 : index
    %c0_0 = arith.constant 0 : index
    %c0_1 = arith.constant 0 : index
    %0 = vector.load %arg1[%c0, %c0_0, %c0_1] : memref<1x32x384xf32, #tpu.memory_space<vmem>>, vector<1x32x384xf32>
    %1 = vector.shape_cast %0 : vector<1x32x384xf32> to vector<32x384xf32>
    %c0_2 = arith.constant 0 : index
    %c0_3 = arith.constant 0 : index
    %2 = vector.load %arg8[%c0_2, %c0_3] : memref<32x384xf32, #tpu.memory_space<vmem>>, vector<32x384xf32>
    tpu.vector_store %arg8[%c0_2, %c0_3], %1 {strides = array<i32>} : memref<32x384xf32, #tpu.memory_space<vmem>>, vector<32x384xf32>,
    %c0_4 = arith.constant 0 : index
    %c0_5 = arith.constant 0 : index
    %c0_6 = arith.constant 0 : index
    %3 = vector.load %arg2[%c0_4, %c0_5, %c0_6] : memref<1x1x128xf32, #tpu.memory_space<vmem>>, vector<1x1x128xf32>
    %4 = vector.shape_cast %3 : vector<1x1x128xf32> to vector<1x128xf32>
    %cst = arith.constant 0.000000e+00 : f32
    %5 = vector.broadcast %cst : f32 to vector<32x128xf32>
    %c0_7 = arith.constant 0 : index
    %c127 = arith.constant 127 : index
    %6 = vector.load %arg8[%c0_7, %c127] : memref<32x384xf32, #tpu.memory_space<vmem>>, vector<32x128xf32>
    %7 = arith.truncf %6 : vector<32x128xf32> to vector<32x128xbf16>
    %c0_8 = arith.constant 0 : index
    %c128 = arith.constant 128 : index
    %8 = vector.load %arg8[%c0_8, %c128] : memref<32x384xf32, #tpu.memory_space<vmem>>, vector<32x128xf32>
    %9 = arith.truncf %8 : vector<32x128xf32> to vector<32x128xbf16>
    %c0_9 = arith.constant 0 : index
    %c129 = arith.constant 129 : index
    %10 = vector.load %arg8[%c0_9, %c129] : memref<32x384xf32, #tpu.memory_space<vmem>>, vector<32x128xf32>
    %11 = arith.truncf %10 : vector<32x128xf32> to vector<32x128xbf16>
    %12 = tpu.concatenate %7, %9, %11 in 0 : vector<32x128xbf16>, vector<32x128xbf16>, vector<32x128xbf16> -> vector<96x128xbf16>
    %c0_10 = arith.constant 0 : index
    %c0_11 = arith.constant 0 : index
    %c0_12 = arith.constant 0 : index
    %13 = vector.load %arg3[%c0_10, %c0_11, %c0_12] : memref<3x64x96xbf16, #tpu.memory_space<vmem>>, vector<1x64x96xbf16>
    %14 = vector.shape_cast %13 : vector<1x64x96xbf16> to vector<64x96xbf16>
    %cst_13 = arith.constant dense<0.000000e+00> : vector<64x128xf32>
    %15 = tpu.matmul %14, %12, %cst_13 {dimension_numbers = #tpu.dot_dimension_numbers<[1], [0], [0], [1], [0, 0, 1, 1], [], []>} : vector<64x96xbf16>, vector<96x128xbf16>, vector<64x128xf32> -> vector<64x128xf32>
    %c0_14 = arith.constant 0 : index
    %c0_15 = arith.constant 0 : index
    %c0_16 = arith.constant 0 : index
    %16 = vector.load %arg4[%c0_14, %c0_15, %c0_16] : memref<3x64x1xf32, #tpu.memory_space<vmem>>, vector<1x64x1xf32>
    %17 = vector.shape_cast %16 : vector<1x64x1xf32> to vector<64x1xf32>
    %18 = vector.broadcast %17 : vector<64x1xf32> to vector<64x128xf32>
    %19 = arith.addf %15, %18 : vector<64x128xf32>
    %20 = vector.extract_strided_slice %19 {offsets = [0, 0], sizes = [32, 128], strides = [1, 1]} : vector<64x128xf32> to vector<32x128xf32>
    %21 = math.tanh %20 : vector<32x128xf32>
    %22 = vector.extract_strided_slice %19 {offsets = [32, 0], sizes = [32, 128], strides = [1, 1]} : vector<64x128xf32> to vector<32x128xf32>
    %cst_17 = arith.constant 0.000000e+00 : f32
    %23 = vector.broadcast %cst_17 : f32 to vector<32x128xf32>
    %24 = arith.subf %23, %22 : vector<32x128xf32>
    %25 = math.exp %24 : vector<32x128xf32>
    %cst_18 = arith.constant 1.000000e+00 : f32
    %26 = vector.broadcast %cst_18 : f32 to vector<32x128xf32>
    %27 = arith.addf %26, %25 : vector<32x128xf32>
    %28 = tpu.reciprocal %27 {approx = true} : vector<32x128xf32> -> vector<32x128xf32>
    %29 = arith.mulf %21, %28 : vector<32x128xf32>
    %30 = arith.truncf %29 : vector<32x128xf32> to vector<32x128xbf16>
    %c0_19 = arith.constant 0 : index
    %c0_20 = arith.constant 0 : index
    %c0_21 = arith.constant 0 : index
    %31 = vector.load %arg5[%c0_19, %c0_20, %c0_21] : memref<3x64x32xbf16, #tpu.memory_space<vmem>>, vector<1x64x32xbf16>
    %32 = vector.shape_cast %31 : vector<1x64x32xbf16> to vector<64x32xbf16>
    %cst_22 = arith.constant dense<0.000000e+00> : vector<64x128xf32>
    %33 = tpu.matmul %32, %30, %cst_22 {dimension_numbers = #tpu.dot_dimension_numbers<[1], [0], [0], [1], [0, 0, 1, 1], [], []>} : vector<64x32xbf16>, vector<32x128xbf16>, vector<64x128xf32> -> vector<64x128xf32>
    %c0_23 = arith.constant 0 : index
    %c0_24 = arith.constant 0 : index
    %c0_25 = arith.constant 0 : index
    %34 = vector.load %arg6[%c0_23, %c0_24, %c0_25] : memref<3x64x1xf32, #tpu.memory_space<vmem>>, vector<1x64x1xf32>
    %35 = vector.shape_cast %34 : vector<1x64x1xf32> to vector<64x1xf32>
    %36 = vector.broadcast %35 : vector<64x1xf32> to vector<64x128xf32>
    %37 = arith.addf %33, %36 : vector<64x128xf32>
    %c0_26 = arith.constant 0 : index
    %c128_27 = arith.constant 128 : index
    %38 = vector.load %arg8[%c0_26, %c128_27] : memref<32x384xf32, #tpu.memory_space<vmem>>, vector<32x128xf32>
    %39 = vector.extract_strided_slice %37 {offsets = [0, 0], sizes = [32, 128], strides = [1, 1]} : vector<64x128xf32> to vector<32x128xf32>
    %40 = arith.addf %38, %39 : vector<32x128xf32>
    %41 = vector.broadcast %4 : vector<1x128xf32> to vector<32x128xf32>
    %42 = arith.mulf %40, %41 : vector<32x128xf32>
    %c0_28 = arith.constant 0 : index
    %c128_29 = arith.constant 128 : index
    %43 = vector.load %arg8[%c0_28, %c128_29] : memref<32x384xf32, #tpu.memory_space<vmem>>, vector<32x128xf32>
    tpu.vector_store %arg8[%c0_28, %c128_29], %42 {strides = array<i32>} : memref<32x384xf32, #tpu.memory_space<vmem>>, vector<32x128xf32>,
    %44 = vector.extract_strided_slice %37 {offsets = [32, 0], sizes = [32, 128], strides = [1, 1]} : vector<64x128xf32> to vector<32x128xf32>
    %45 = arith.addf %5, %44 : vector<32x128xf32>
    %c0_30 = arith.constant 0 : index
    %c126 = arith.constant 126 : index
    %46 = vector.load %arg8[%c0_30, %c126] : memref<32x384xf32, #tpu.memory_space<vmem>>, vector<32x128xf32>
    %47 = arith.truncf %46 : vector<32x128xf32> to vector<32x128xbf16>
    %c0_31 = arith.constant 0 : index
    %c128_32 = arith.constant 128 : index
    %48 = vector.load %arg8[%c0_31, %c128_32] : memref<32x384xf32, #tpu.memory_space<vmem>>, vector<32x128xf32>
    %49 = arith.truncf %48 : vector<32x128xf32> to vector<32x128xbf16>
    %c0_33 = arith.constant 0 : index
    %c130 = arith.constant 130 : index
    %50 = vector.load %arg8[%c0_33, %c130] : memref<32x384xf32, #tpu.memory_space<vmem>>, vector<32x128xf32>
    %51 = arith.truncf %50 : vector<32x128xf32> to vector<32x128xbf16>
    %52 = tpu.concatenate %47, %49, %51 in 0 : vector<32x128xbf16>, vector<32x128xbf16>, vector<32x128xbf16> -> vector<96x128xbf16>
    %c1 = arith.constant 1 : index
    %c0_34 = arith.constant 0 : index
    %c0_35 = arith.constant 0 : index
    %53 = vector.load %arg3[%c1, %c0_34, %c0_35] : memref<3x64x96xbf16, #tpu.memory_space<vmem>>, vector<1x64x96xbf16>
    %54 = vector.shape_cast %53 : vector<1x64x96xbf16> to vector<64x96xbf16>
    %cst_36 = arith.constant dense<0.000000e+00> : vector<64x128xf32>
    %55 = tpu.matmul %54, %52, %cst_36 {dimension_numbers = #tpu.dot_dimension_numbers<[1], [0], [0], [1], [0, 0, 1, 1], [], []>} : vector<64x96xbf16>, vector<96x128xbf16>, vector<64x128xf32> -> vector<64x128xf32>
    %c1_37 = arith.constant 1 : index
    %c0_38 = arith.constant 0 : index
    %c0_39 = arith.constant 0 : index
    %56 = vector.load %arg4[%c1_37, %c0_38, %c0_39] : memref<3x64x1xf32, #tpu.memory_space<vmem>>, vector<1x64x1xf32>
    %57 = vector.shape_cast %56 : vector<1x64x1xf32> to vector<64x1xf32>
    %58 = vector.broadcast %57 : vector<64x1xf32> to vector<64x128xf32>
    %59 = arith.addf %55, %58 : vector<64x128xf32>
    %60 = vector.extract_strided_slice %59 {offsets = [0, 0], sizes = [32, 128], strides = [1, 1]} : vector<64x128xf32> to vector<32x128xf32>
    %61 = math.tanh %60 : vector<32x128xf32>
    %62 = vector.extract_strided_slice %59 {offsets = [32, 0], sizes = [32, 128], strides = [1, 1]} : vector<64x128xf32> to vector<32x128xf32>
    %cst_40 = arith.constant 0.000000e+00 : f32
    %63 = vector.broadcast %cst_40 : f32 to vector<32x128xf32>
    %64 = arith.subf %63, %62 : vector<32x128xf32>
    %65 = math.exp %64 : vector<32x128xf32>
    %cst_41 = arith.constant 1.000000e+00 : f32
    %66 = vector.broadcast %cst_41 : f32 to vector<32x128xf32>
    %67 = arith.addf %66, %65 : vector<32x128xf32>
    %68 = tpu.reciprocal %67 {approx = true} : vector<32x128xf32> -> vector<32x128xf32>
    %69 = arith.mulf %61, %68 : vector<32x128xf32>
    %70 = arith.truncf %69 : vector<32x128xf32> to vector<32x128xbf16>
    %c1_42 = arith.constant 1 : index
    %c0_43 = arith.constant 0 : index
    %c0_44 = arith.constant 0 : index
    %71 = vector.load %arg5[%c1_42, %c0_43, %c0_44] : memref<3x64x32xbf16, #tpu.memory_space<vmem>>, vector<1x64x32xbf16>
    %72 = vector.shape_cast %71 : vector<1x64x32xbf16> to vector<64x32xbf16>
    %cst_45 = arith.constant dense<0.000000e+00> : vector<64x128xf32>
    %73 = tpu.matmul %72, %70, %cst_45 {dimension_numbers = #tpu.dot_dimension_numbers<[1], [0], [0], [1], [0, 0, 1, 1], [], []>} : vector<64x32xbf16>, vector<32x128xbf16>, vector<64x128xf32> -> vector<64x128xf32>
    %c1_46 = arith.constant 1 : index
    %c0_47 = arith.constant 0 : index
    %c0_48 = arith.constant 0 : index
    %74 = vector.load %arg6[%c1_46, %c0_47, %c0_48] : memref<3x64x1xf32, #tpu.memory_space<vmem>>, vector<1x64x1xf32>
    %75 = vector.shape_cast %74 : vector<1x64x1xf32> to vector<64x1xf32>
    %76 = vector.broadcast %75 : vector<64x1xf32> to vector<64x128xf32>
    %77 = arith.addf %73, %76 : vector<64x128xf32>
    %c0_49 = arith.constant 0 : index
    %c128_50 = arith.constant 128 : index
    %78 = vector.load %arg8[%c0_49, %c128_50] : memref<32x384xf32, #tpu.memory_space<vmem>>, vector<32x128xf32>
    %79 = vector.extract_strided_slice %77 {offsets = [0, 0], sizes = [32, 128], strides = [1, 1]} : vector<64x128xf32> to vector<32x128xf32>
    %80 = arith.addf %78, %79 : vector<32x128xf32>
    %81 = vector.broadcast %4 : vector<1x128xf32> to vector<32x128xf32>
    %82 = arith.mulf %80, %81 : vector<32x128xf32>
    %c0_51 = arith.constant 0 : index
    %c128_52 = arith.constant 128 : index
    %83 = vector.load %arg8[%c0_51, %c128_52] : memref<32x384xf32, #tpu.memory_space<vmem>>, vector<32x128xf32>
    tpu.vector_store %arg8[%c0_51, %c128_52], %82 {strides = array<i32>} : memref<32x384xf32, #tpu.memory_space<vmem>>, vector<32x128xf32>,
    %84 = vector.extract_strided_slice %77 {offsets = [32, 0], sizes = [32, 128], strides = [1, 1]} : vector<64x128xf32> to vector<32x128xf32>
    %85 = arith.addf %45, %84 : vector<32x128xf32>
    %c0_53 = arith.constant 0 : index
    %c124 = arith.constant 124 : index
    %86 = vector.load %arg8[%c0_53, %c124] : memref<32x384xf32, #tpu.memory_space<vmem>>, vector<32x128xf32>
    %87 = arith.truncf %86 : vector<32x128xf32> to vector<32x128xbf16>
    %c0_54 = arith.constant 0 : index
    %c128_55 = arith.constant 128 : index
    %88 = vector.load %arg8[%c0_54, %c128_55] : memref<32x384xf32, #tpu.memory_space<vmem>>, vector<32x128xf32>
    %89 = arith.truncf %88 : vector<32x128xf32> to vector<32x128xbf16>
    %c0_56 = arith.constant 0 : index
    %c132 = arith.constant 132 : index
    %90 = vector.load %arg8[%c0_56, %c132] : memref<32x384xf32, #tpu.memory_space<vmem>>, vector<32x128xf32>
    %91 = arith.truncf %90 : vector<32x128xf32> to vector<32x128xbf16>
    %92 = tpu.concatenate %87, %89, %91 in 0 : vector<32x128xbf16>, vector<32x128xbf16>, vector<32x128xbf16> -> vector<96x128xbf16>
    %c2 = arith.constant 2 : index
    %c0_57 = arith.constant 0 : index
    %c0_58 = arith.constant 0 : index
    %93 = vector.load %arg3[%c2, %c0_57, %c0_58] : memref<3x64x96xbf16, #tpu.memory_space<vmem>>, vector<1x64x96xbf16>
    %94 = vector.shape_cast %93 : vector<1x64x96xbf16> to vector<64x96xbf16>
    %cst_59 = arith.constant dense<0.000000e+00> : vector<64x128xf32>
    %95 = tpu.matmul %94, %92, %cst_59 {dimension_numbers = #tpu.dot_dimension_numbers<[1], [0], [0], [1], [0, 0, 1, 1], [], []>} : vector<64x96xbf16>, vector<96x128xbf16>, vector<64x128xf32> -> vector<64x128xf32>
    %c2_60 = arith.constant 2 : index
    %c0_61 = arith.constant 0 : index
    %c0_62 = arith.constant 0 : index
    %96 = vector.load %arg4[%c2_60, %c0_61, %c0_62] : memref<3x64x1xf32, #tpu.memory_space<vmem>>, vector<1x64x1xf32>
    %97 = vector.shape_cast %96 : vector<1x64x1xf32> to vector<64x1xf32>
    %98 = vector.broadcast %97 : vector<64x1xf32> to vector<64x128xf32>
    %99 = arith.addf %95, %98 : vector<64x128xf32>
    %100 = vector.extract_strided_slice %99 {offsets = [0, 0], sizes = [32, 128], strides = [1, 1]} : vector<64x128xf32> to vector<32x128xf32>
    %101 = math.tanh %100 : vector<32x128xf32>
    %102 = vector.extract_strided_slice %99 {offsets = [32, 0], sizes = [32, 128], strides = [1, 1]} : vector<64x128xf32> to vector<32x128xf32>
    %cst_63 = arith.constant 0.000000e+00 : f32
    %103 = vector.broadcast %cst_63 : f32 to vector<32x128xf32>
    %104 = arith.subf %103, %102 : vector<32x128xf32>
    %105 = math.exp %104 : vector<32x128xf32>
    %cst_64 = arith.constant 1.000000e+00 : f32
    %106 = vector.broadcast %cst_64 : f32 to vector<32x128xf32>
    %107 = arith.addf %106, %105 : vector<32x128xf32>
    %108 = tpu.reciprocal %107 {approx = true} : vector<32x128xf32> -> vector<32x128xf32>
    %109 = arith.mulf %101, %108 : vector<32x128xf32>
    %110 = arith.truncf %109 : vector<32x128xf32> to vector<32x128xbf16>
    %c2_65 = arith.constant 2 : index
    %c0_66 = arith.constant 0 : index
    %c0_67 = arith.constant 0 : index
    %111 = vector.load %arg5[%c2_65, %c0_66, %c0_67] : memref<3x64x32xbf16, #tpu.memory_space<vmem>>, vector<1x64x32xbf16>
    %112 = vector.shape_cast %111 : vector<1x64x32xbf16> to vector<64x32xbf16>
    %cst_68 = arith.constant dense<0.000000e+00> : vector<64x128xf32>
    %113 = tpu.matmul %112, %110, %cst_68 {dimension_numbers = #tpu.dot_dimension_numbers<[1], [0], [0], [1], [0, 0, 1, 1], [], []>} : vector<64x32xbf16>, vector<32x128xbf16>, vector<64x128xf32> -> vector<64x128xf32>
    %c2_69 = arith.constant 2 : index
    %c0_70 = arith.constant 0 : index
    %c0_71 = arith.constant 0 : index
    %114 = vector.load %arg6[%c2_69, %c0_70, %c0_71] : memref<3x64x1xf32, #tpu.memory_space<vmem>>, vector<1x64x1xf32>
    %115 = vector.shape_cast %114 : vector<1x64x1xf32> to vector<64x1xf32>
    %116 = vector.broadcast %115 : vector<64x1xf32> to vector<64x128xf32>
    %117 = arith.addf %113, %116 : vector<64x128xf32>
    %118 = vector.extract_strided_slice %117 {offsets = [0, 0], sizes = [32, 128], strides = [1, 1]} : vector<64x128xf32> to vector<32x128xf32>
    %119 = arith.addf %85, %118 : vector<32x128xf32>
    %120 = vector.broadcast %4 : vector<1x128xf32> to vector<32x128xf32>
    %121 = arith.mulf %119, %120 : vector<32x128xf32>
    %c0_72 = arith.constant 0 : index
    %c0_73 = arith.constant 0 : index
    %c0_74 = arith.constant 0 : index
    %122 = vector.load %arg7[%c0_72, %c0_73, %c0_74] : memref<1x32x128xf32, #tpu.memory_space<vmem>>, vector<1x32x128xf32>
    %123 = vector.shape_cast %122 : vector<1x32x128xf32> to vector<32x128xf32>
    %124 = vector.shape_cast %121 : vector<32x128xf32> to vector<1x32x128xf32>
    tpu.vector_store %arg7[%c0_72, %c0_73, %c0_74], %124 {strides = array<i32>} : memref<1x32x128xf32, #tpu.memory_space<vmem>>, vector<1x32x128xf32>,
    return
  }
  func.func @transform_0(%arg0: i32) -> (i32, i32, i32) {
    %c0_i32 = arith.constant 0 : i32
    %c0_i32_0 = arith.constant 0 : i32
    %c0_i32_1 = arith.constant 0 : i32
    return %arg0, %c0_i32, %c0_i32_0 : i32, i32, i32
  }
  func.func @transform_1(%arg0: i32) -> (i32, i32, i32) {
    %c0_i32 = arith.constant 0 : i32
    %c0_i32_0 = arith.constant 0 : i32
    %c0_i32_1 = arith.constant 0 : i32
    return %arg0, %c0_i32, %c0_i32_0 : i32, i32, i32
  }
  func.func @transform_2(%arg0: i32) -> (i32, i32, i32) {
    %c0_i32 = arith.constant 0 : i32
    %c0_i32_0 = arith.constant 0 : i32
    %c0_i32_1 = arith.constant 0 : i32
    %c0_i32_2 = arith.constant 0 : i32
    return %c0_i32, %c0_i32_0, %c0_i32_1 : i32, i32, i32
  }
  func.func @transform_3(%arg0: i32) -> (i32, i32, i32) {
    %c0_i32 = arith.constant 0 : i32
    %c0_i32_0 = arith.constant 0 : i32
    %c0_i32_1 = arith.constant 0 : i32
    %c0_i32_2 = arith.constant 0 : i32
    return %c0_i32, %c0_i32_0, %c0_i32_1 : i32, i32, i32
  }
  func.func @transform_4(%arg0: i32) -> (i32, i32, i32) {
    %c0_i32 = arith.constant 0 : i32
    %c0_i32_0 = arith.constant 0 : i32
    %c0_i32_1 = arith.constant 0 : i32
    %c0_i32_2 = arith.constant 0 : i32
    return %c0_i32, %c0_i32_0, %c0_i32_1 : i32, i32, i32
  }
  func.func @transform_5(%arg0: i32) -> (i32, i32, i32) {
    %c0_i32 = arith.constant 0 : i32
    %c0_i32_0 = arith.constant 0 : i32
    %c0_i32_1 = arith.constant 0 : i32
    %c0_i32_2 = arith.constant 0 : i32
    return %c0_i32, %c0_i32_0, %c0_i32_1 : i32, i32, i32
  }
  func.func @transform_6(%arg0: i32) -> (i32, i32, i32) {
    %c0_i32 = arith.constant 0 : i32
    %c0_i32_0 = arith.constant 0 : i32
    %c0_i32_1 = arith.constant 0 : i32
    return %arg0, %c0_i32, %c0_i32_0 : i32, i32, i32
  }
}

</mosaic_0001>

<llo_original>
// kernel: wn_forward.1
$region0: #{wn_forward.1}
  #allocation0 [shape = 'u32[]', space=smem, size = 0x4, offset = 0x4, fixed_abs, tag = 'smem constant byte address 0x4 - core index']
  #allocation1 [shape = 'u32[144,128]{1,0:T(1,128)}', space=vmem, size = 0x12000, scoped, tag = 'internal scratch']
  #allocation2 [shape = 'f32[32,384]{1,0:T(8,128)}', space=vmem, size = 0xc000, scoped, tag = 'scratch operand']
  %s0 = inlined_call_operand.vmem [shape: f32[2,32,384], index: 0, kind: input, shape index: {}]
  %s1 = inlined_call_operand.vmem [shape: f32[2,1,128], index: 1, kind: input, shape index: {}]
  %s2 = inlined_call_operand.vmem [shape: bf16[3,64,96], index: 2, kind: input, shape index: {}]
  %s3 = inlined_call_operand.vmem [shape: f32[3,64,1], index: 3, kind: input, shape index: {}]
  %s4 = inlined_call_operand.vmem [shape: bf16[3,64,32], index: 4, kind: input, shape index: {}]
  %s5 = inlined_call_operand.vmem [shape: f32[3,64,1], index: 5, kind: input, shape index: {}]
  %s6 = inlined_call_operand.hbm [shape: f32[2,32,128], index: 6, kind: output, shape index: {}]
  %s7 = sld [smem:[#allocation0]]
  $region57: #{wn_forward.1} parent=0
    _
  %s9 = ssub.s32 1, %s7
  %s10 = scalar_select 0, %s9, %s7
  $region1: #{wn_forward.1} parent=0
    #allocation3 [shape = 'u8[32768]{0}', space=vmem, size = 0x8000, scoped, tag = 'output window, operand 0']
    #allocation4 [shape = 's32[2]{0}', space=sflag, size = 0x8, scoped, tag = 'scoped memory for wn_forward.1']
    %11 = vsyncpa [#allocation4], 0
    %s12 = scalar_lea.sflag [#allocation4], 1
    %13 = vsyncpa %s12, 0
    loop: start=0, step=1, limit=4
    $region2: #{wn_forward.1} parent=1 // loop_pre_header
      _
    $region3: #{wn_forward.1} parent=1 // loop_header
      %s15 = sphi 0, %s19
      %p16 = scmp.ge.s32.totalorder %s15, 4
      %s25 = sphi 0, %s27
      %s28 = sphi 0, %s25
      %s29 = sphi 0, %s28
      %s45 = sphi 0, %s29
      %s51 = sphi 0, %s53
      %s54 = sphi 0, %s51
      %s55 = sphi 0, %s54
      %s71 = sphi 0, %s55
      %s75 = sphi 0, %s75
      %s77 = sphi 0, %s75
      %s78 = sphi 0, %s77
      %s92 = sphi 0, %s78
      %s96 = sphi 0, %s96
      %s98 = sphi 0, %s96
      %s99 = sphi 0, %s98
      %s113 = sphi 0, %s99
      %s117 = sphi 0, %s117
      %s119 = sphi 0, %s117
      %s120 = sphi 0, %s119
      %s134 = sphi 0, %s120
      %s138 = sphi 0, %s138
      %s140 = sphi 0, %s138
      %s141 = sphi 0, %s140
      %s155 = sphi 0, %s141
      %s161 = sphi 0, %s163
      %s164 = sphi 0, %s161
      %s165 = sphi 0, %s164
      %s181 = sphi 0, %s165
    $region4: #{wn_forward.1} parent=1 // loop_header_branch
      %18 = sbr.rel (%p16) target = $region8
    $region5: #{wn_forward.1} parent=1 // loop_body
      %s20 = ssub.s32 %s15, 1
      %s21 = ssub.s32 %s15, 2
      %s22 = sadd.s32 %s15, 1
      %s23 = ssub.s32 %s15, %s22
      %p24 = scmp.eq.s32.totalorder %s23, 0
      %s26 = sadd.s32 %s25, 1
      %s27 = scalar_select %p24, %s25, %s26
      %p30 = pneg %p24
      %p31 = scmp.eq.s32.totalorder %s15, 1
      %p32 = por %p30, %p31
      %p33 = scmp.ne.s32.totalorder %s25, %s28
      %p34 = scmp.eq.s32.totalorder %s15, 0
      %p35 = por %p33, %p34
      %p36 = scmp.ne.s32.totalorder %s25, %s28
      %p37 = scmp.eq.s32.totalorder %s20, 1
      %p38 = por %p36, %p37
      %p39 = scmp.ne.s32.totalorder %s28, %s29
      %p40 = scmp.eq.s32.totalorder %s20, 0
      %p41 = por %p39, %p40
      %p42 = scmp.ne.s32.totalorder %s28, %s29
      %p43 = scmp.eq.s32.totalorder %s21, 1
      %p44 = por %p42, %p43
      %p46 = scmp.ne.s32.totalorder %s29, %s45
      %p47 = scmp.eq.s32.totalorder %s21, 0
      %p48 = por %p46, %p47
      %s49 = ssub.s32 %s15, %s22
      %p50 = scmp.eq.s32.totalorder %s49, 0
      %s52 = sadd.s32 %s51, 1
      %s53 = scalar_select %p50, %s51, %s52
      %p56 = pneg %p50
      %p57 = scmp.eq.s32.totalorder %s15, 1
      %p58 = por %p56, %p57
      %p59 = scmp.ne.s32.totalorder %s51, %s54
      %p60 = scmp.eq.s32.totalorder %s15, 0
      %p61 = por %p59, %p60
      %p62 = scmp.ne.s32.totalorder %s51, %s54
      %p63 = scmp.eq.s32.totalorder %s20, 1
      %p64 = por %p62, %p63
      %p65 = scmp.ne.s32.totalorder %s54, %s55
      %p66 = scmp.eq.s32.totalorder %s20, 0
      %p67 = por %p65, %p66
      %p68 = scmp.ne.s32.totalorder %s54, %s55
      %p69 = scmp.eq.s32.totalorder %s21, 1
      %p70 = por %p68, %p69
      %p72 = scmp.ne.s32.totalorder %s55, %s71
      %p73 = scmp.eq.s32.totalorder %s21, 0
      %p74 = por %p72, %p73
      %s76 = sadd.s32 %s75, 1
      %p79 = scmp.eq.s32.totalorder %s15, 1
      %p80 = scmp.ne.s32.totalorder %s75, %s77
      %p81 = scmp.eq.s32.totalorder %s15, 0
      %p82 = por %p80, %p81
      %p83 = scmp.ne.s32.totalorder %s75, %s77
      %p84 = scmp.eq.s32.totalorder %s20, 1
      %p85 = por %p83, %p84
      %p86 = scmp.ne.s32.totalorder %s77, %s78
      %p87 = scmp.eq.s32.totalorder %s20, 0
      %p88 = por %p86, %p87
      %p89 = scmp.ne.s32.totalorder %s77, %s78
      %p90 = scmp.eq.s32.totalorder %s21, 1
      %p91 = por %p89, %p90
      %p93 = scmp.ne.s32.totalorder %s78, %s92
      %p94 = scmp.eq.s32.totalorder %s21, 0
      %p95 = por %p93, %p94
      %s97 = sadd.s32 %s96, 1
      %p100 = scmp.eq.s32.totalorder %s15, 1
      %p101 = scmp.ne.s32.totalorder %s96, %s98
      %p102 = scmp.eq.s32.totalorder %s15, 0
      %p103 = por %p101, %p102
      %p104 = scmp.ne.s32.totalorder %s96, %s98
      %p105 = scmp.eq.s32.totalorder %s20, 1
      %p106 = por %p104, %p105
      %p107 = scmp.ne.s32.totalorder %s98, %s99
      %p108 = scmp.eq.s32.totalorder %s20, 0
      %p109 = por %p107, %p108
      %p110 = scmp.ne.s32.totalorder %s98, %s99
      %p111 = scmp.eq.s32.totalorder %s21, 1
      %p112 = por %p110, %p111
      %p114 = scmp.ne.s32.totalorder %s99, %s113
      %p115 = scmp.eq.s32.totalorder %s21, 0
      %p116 = por %p114, %p115
      %s118 = sadd.s32 %s117, 1
      %p121 = scmp.eq.s32.totalorder %s15, 1
      %p122 = scmp.ne.s32.totalorder %s117, %s119
      %p123 = scmp.eq.s32.totalorder %s15, 0
      %p124 = por %p122, %p123
      %p125 = scmp.ne.s32.totalorder %s117, %s119
      %p126 = scmp.eq.s32.totalorder %s20, 1
      %p127 = por %p125, %p126
      %p128 = scmp.ne.s32.totalorder %s119, %s120
      %p129 = scmp.eq.s32.totalorder %s20, 0
      %p130 = por %p128, %p129
      %p131 = scmp.ne.s32.totalorder %s119, %s120
      %p132 = scmp.eq.s32.totalorder %s21, 1
      %p133 = por %p131, %p132
      %p135 = scmp.ne.s32.totalorder %s120, %s134
      %p136 = scmp.eq.s32.totalorder %s21, 0
      %p137 = por %p135, %p136
      %s139 = sadd.s32 %s138, 1
      %p142 = scmp.eq.s32.totalorder %s15, 1
      %p143 = scmp.ne.s32.totalorder %s138, %s140
      %p144 = scmp.eq.s32.totalorder %s15, 0
      %p145 = por %p143, %p144
      %p146 = scmp.ne.s32.totalorder %s138, %s140
      %p147 = scmp.eq.s32.totalorder %s20, 1
      %p148 = por %p146, %p147
      %p149 = scmp.ne.s32.totalorder %s140, %s141
      %p150 = scmp.eq.s32.totalorder %s20, 0
      %p151 = por %p149, %p150
      %p152 = scmp.ne.s32.totalorder %s140, %s141
      %p153 = scmp.eq.s32.totalorder %s21, 1
      %p154 = por %p152, %p153
      %p156 = scmp.ne.s32.totalorder %s141, %s155
      %p157 = scmp.eq.s32.totalorder %s21, 0
      %p158 = por %p156, %p157
      %s159 = ssub.s32 %s15, %s22
      %p160 = scmp.eq.s32.totalorder %s159, 0
      %s162 = sadd.s32 %s161, 1
      %s163 = scalar_select %p160, %s161, %s162
      %p166 = pneg %p160
      %p167 = scmp.eq.s32.totalorder %s15, 1
      %p168 = por %p166, %p167
      %p169 = scmp.ne.s32.totalorder %s161, %s164
      %p170 = scmp.eq.s32.totalorder %s15, 0
      %p171 = por %p169, %p170
      %p172 = scmp.ne.s32.totalorder %s161, %s164
      %p173 = scmp.eq.s32.totalorder %s20, 1
      %p174 = por %p172, %p173
      %p175 = scmp.ne.s32.totalorder %s164, %s165
      %p176 = scmp.eq.s32.totalorder %s20, 0
      %p177 = por %p175, %p176
      %p178 = scmp.ne.s32.totalorder %s164, %s165
      %p179 = scmp.eq.s32.totalorder %s21, 1
      %p180 = por %p178, %p179
      %p182 = scmp.ne.s32.totalorder %s165, %s181
      %p183 = scmp.eq.s32.totalorder %s21, 0
      %p184 = por %p182, %p183
      %p185 = scmp.le.s32.totalorder 1, %s15
      %p186 = scmp.lt.s32.totalorder %s15, 3
      %p187 = pnand %p185, %p186
      %p188 = pneg %p187
      // Predicated region
      $region9: #{wn_forward.1} parent=5 // pred_check
        _
      $region10: #{wn_forward.1} parent=5 // pred_check_branch
        %190 = sbr.rel (%p187) target = $region12
      $region11: #{wn_forward.1} parent=5 // pred_region
        %s191 = ssub.s32 %s15, 1
        // Predicated region
        $region13: #{wn_forward.1} parent=11 // pred_check
          %p192 = pneg %p88
        $region14: #{wn_forward.1} parent=11 // pred_check_branch
          %194 = sbr.rel (%p192) target = $region16
        $region15: #{wn_forward.1} parent=11 // pred_region
          _
        $region16: #{wn_forward.1} parent=11 // pred_fallthru
          _
        // Predicated region
        $region17: #{wn_forward.1} parent=11 // pred_check
          %p195 = pneg %p109
        $region18: #{wn_forward.1} parent=11 // pred_check_branch
          %197 = sbr.rel (%p195) target = $region20
        $region19: #{wn_forward.1} parent=11 // pred_region
          _
        $region20: #{wn_forward.1} parent=11 // pred_fallthru
          _
        // Predicated region
        $region21: #{wn_forward.1} parent=11 // pred_check
          %p198 = pneg %p130
        $region22: #{wn_forward.1} parent=11 // pred_check_branch
          %200 = sbr.rel (%p198) target = $region24
        $region23: #{wn_forward.1} parent=11 // pred_region
          _
        $region24: #{wn_forward.1} parent=11 // pred_fallthru
          _
        // Predicated region
        $region25: #{wn_forward.1} parent=11 // pred_check
          %p201 = pneg %p151
        $region26: #{wn_forward.1} parent=11 // pred_check_branch
          %203 = sbr.rel (%p201) target = $region28
        $region27: #{wn_forward.1} parent=11 // pred_region
          _
        $region28: #{wn_forward.1} parent=11 // pred_fallthru
          _
      $region12: #{wn_forward.1} parent=5 // pred_fallthru
        _
      %p204 = scmp.lt.s32.totalorder %s15, 2
      // Predicated region
      $region29: #{wn_forward.1} parent=5 // pred_check
        %p205 = pneg %p204
      $region30: #{wn_forward.1} parent=5 // pred_check_branch
        %207 = sbr.rel (%p205) target = $region32
      $region31: #{wn_forward.1} parent=5 // pred_region
        // Predicated region
        $region33: #{wn_forward.1} parent=31 // pred_check
          %p208 = pneg %p35
        $region34: #{wn_forward.1} parent=31 // pred_check_branch
          %210 = sbr.rel (%p208) target = $region36
        $region35: #{wn_forward.1} parent=31 // pred_region
          %p211 = scmp.lt.s32.totalorder %s15, 1
          %s212 = scalar_select %p211, %s15, 1
          %s213 = smul.addr %s212, 12
          %s214 = smul.addr %s213, 8
          %s215 = scalar_lea.vmem %s0, %s214
        $region36: #{wn_forward.1} parent=31 // pred_fallthru
          _
        // Predicated region
        $region37: #{wn_forward.1} parent=31 // pred_check
          %p216 = pneg %p61
        $region38: #{wn_forward.1} parent=31 // pred_check_branch
          %218 = sbr.rel (%p216) target = $region40
        $region39: #{wn_forward.1} parent=31 // pred_region
          %p219 = scmp.lt.s32.totalorder %s15, 1
          %s220 = scalar_select %p219, %s15, 1
          %s221 = scalar_lea.vmem %s1, %s220
        $region40: #{wn_forward.1} parent=31 // pred_fallthru
          _
      $region32: #{wn_forward.1} parent=5 // pred_fallthru
        _
      %p222 = scmp.le.s32.totalorder 1, %s15
      %p223 = scmp.lt.s32.totalorder %s15, 3
      %p224 = pnand %p222, %p223
      %p225 = pneg %p224
      // Predicated region
      $region41: #{wn_forward.1} parent=5 // pred_check
        _
      $region42: #{wn_forward.1} parent=5 // pred_check_branch
        %227 = sbr.rel (%p224) target = $region44
      $region43: #{wn_forward.1} parent=5 // pred_region
        %s228 = ssub.s32 %s15, 1
        %p229 = scmp.lt.s32.totalorder %s20, 1
        %s230 = scalar_select %p229, %s20, 1
        %s231 = smul.addr %s230, 12
        %s232 = smul.addr %s231, 8
        %s233 = scalar_lea.vmem %s0, %s232
        %p234 = pneg %p41
        %p235 = pneg %p38
        %p236 = scmp.lt.s32.totalorder %s20, 1
        %s237 = scalar_select %p236, %s20, 1
        %s238 = scalar_lea.vmem %s1, %s237
        %p239 = pneg %p67
        %p240 = pneg %p64
        %p241 = pneg %p88
        %p242 = pneg %p85
        %p243 = pneg %p109
        %p244 = pneg %p106
        %p245 = pneg %p130
        %p246 = pneg %p127
        %p247 = pneg %p151
        %p248 = pneg %p148
        %p249 = pneg %p177
        %p250 = pneg %p174
        %s251 = sand.u32 %s164, 1
        %s252 = scalar_lea.sflag [#allocation4], %s251
        %s253 = sand.u32 %s164, 1
        %s254 = smul.addr %s253, 32
        %s255 = scalar_lea.vmem [#allocation3], %s254
        %p256 = scmp.lt.s32.totalorder %s20, 1
        %s257 = scalar_select %p256, %s20, 1
        %s258 = smul.addr %s257, 12
        %s259 = smul.addr %s258, 8
        %s260 = scalar_lea.vmem %s0, %s259
        %p261 = scmp.lt.s32.totalorder %s20, 1
        %s262 = scalar_select %p261, %s20, 1
        %s263 = scalar_lea.vmem %s1, %s262
        %v265 = vld [vmem:[%s260] sm:$0xff]
        %v266 = vld [vmem:[%s260 + $0x8] sm:$0xff]
        %v267 = vld [vmem:[%s260 + $0x10] sm:$0xff]
        %v268 = vld [vmem:[%s260 + $0x18] sm:$0xff]
        %v269 = vld [vmem:[%s260 + $0x20] sm:$0xff]
        %v270 = vld [vmem:[%s260 + $0x28] sm:$0xff]
        %v271 = vld [vmem:[%s260 + $0x30] sm:$0xff]
        %v272 = vld [vmem:[%s260 + $0x38] sm:$0xff]
        %v273 = vld [vmem:[%s260 + $0x40] sm:$0xff]
        %v274 = vld [vmem:[%s260 + $0x48] sm:$0xff]
        %v275 = vld [vmem:[%s260 + $0x50] sm:$0xff]
        %v276 = vld [vmem:[%s260 + $0x58] sm:$0xff]
        %277 = vst [vmem:[#allocation2] sm:$0xff] %v265
        %278 = vst [vmem:[#allocation2 + $0x8] sm:$0xff] %v266
        %279 = vst [vmem:[#allocation2 + $0x10] sm:$0xff] %v267
        %280 = vst [vmem:[#allocation2 + $0x18] sm:$0xff] %v268
        %281 = vst [vmem:[#allocation2 + $0x20] sm:$0xff] %v269
        %282 = vst [vmem:[#allocation2 + $0x28] sm:$0xff] %v270
        %283 = vst [vmem:[#allocation2 + $0x30] sm:$0xff] %v271
        %284 = vst [vmem:[#allocation2 + $0x38] sm:$0xff] %v272
        %285 = vst [vmem:[#allocation2 + $0x40] sm:$0xff] %v273
        %286 = vst [vmem:[#allocation2 + $0x48] sm:$0xff] %v274
        %287 = vst [vmem:[#allocation2 + $0x50] sm:$0xff] %v275
        %288 = vst [vmem:[#allocation2 + $0x58] sm:$0xff] %v276
        %v289 = vld [vmem:[%s263] sm:$0x1]
        %v290 = vld [vmem:[#allocation2] sm:$0xff]
        %v291 = vld [vmem:[#allocation2 + $0x8] sm:$0xff]
        %v292 = vld [vmem:[#allocation2 + $0x18] sm:$0xff]
        %v293 = vld [vmem:[#allocation2 + $0x20] sm:$0xff]
        %v294 = vld [vmem:[#allocation2 + $0x30] sm:$0xff]
        %v295 = vld [vmem:[#allocation2 + $0x38] sm:$0xff]
        %v296 = vld [vmem:[#allocation2 + $0x48] sm:$0xff]
        %v297 = vld [vmem:[#allocation2 + $0x50] sm:$0xff]
        %v298 = vpack.c.bf16 %v292, %v290
        %v299 = vpack.c.bf16 %v293, %v291
        %v300 = vpack.c.bf16 %v296, %v294
        %v301 = vpack.c.bf16 %v297, %v295
        %v302 = vld [vmem:[#allocation2 + $0x8] sm:$0xff]
        %v303 = vld [vmem:[#allocation2 + $0x10] sm:$0xff]
        %v304 = vld [vmem:[#allocation2 + $0x20] sm:$0xff]
        %v305 = vld [vmem:[#allocation2 + $0x28] sm:$0xff]
        %v306 = vld [vmem:[#allocation2 + $0x38] sm:$0xff]
        %v307 = vld [vmem:[#allocation2 + $0x40] sm:$0xff]
        %v308 = vld [vmem:[#allocation2 + $0x50] sm:$0xff]
        %v309 = vld [vmem:[#allocation2 + $0x58] sm:$0xff]
        %v310 = vpack.c.bf16 %v304, %v302
        %v311 = vpack.c.bf16 %v305, %v303
        %v312 = vpack.c.bf16 %v308, %v306
        %v313 = vpack.c.bf16 %v309, %v307
        %316 = vrot.lane.b32.xlu0 %v299, 127
        %v317 = vpop.permute.xlu0 %316
        %318 = vrot.lane.b32.xlu0 %v301, 127
        %v319 = vpop.permute.xlu0 %318
        %324 = vrot.lane.b32.xlu0 %v310, 126
        %v325 = vpop.permute.xlu0 %324
        %326 = vrot.lane.b32.xlu0 %v311, 126
        %v327 = vpop.permute.xlu0 %326
        %328 = vrot.lane.b32.xlu0 %v312, 126
        %v329 = vpop.permute.xlu0 %328
        %330 = vrot.lane.b32.xlu0 %v313, 126
        %v331 = vpop.permute.xlu0 %330
        %vm332 = vcmask 1031168
        %v333 = vsel %vm332, %v325, %v327
        %v334 = vsel %vm332, %v329, %v331
        %v335 = vld [vmem:[%s2] sm:$0xf]
        %v336 = vld [vmem:[%s2 + $0x4] sm:$0xf]
        %v337 = vld [vmem:[%s2 + $0x8] sm:$0xf]
        %v338 = vld [vmem:[%s2 + $0xc] sm:$0xf]
        %v339 = vld [vmem:[%s2 + $0x10] sm:$0xf]
        %v340 = vld [vmem:[%s2 + $0x14] sm:$0xf]
        %v341 = vld [vmem:[%s2 + $0x18] sm:$0xf]
        %v342 = vld [vmem:[%s2 + $0x1c] sm:$0xf]
        %v343 = vld [vmem:[%s3] sm:$0xff]
        %v344 = vld [vmem:[%s3 + $0x8] sm:$0xff]
        %v345 = vld [vmem:[%s3 + $0x10] sm:$0xff]
        %v346 = vld [vmem:[%s3 + $0x18] sm:$0xff]
        %v347 = vld [vmem:[%s3 + $0x20] sm:$0xff]
        %v348 = vld [vmem:[%s3 + $0x28] sm:$0xff]
        %v349 = vld [vmem:[%s3 + $0x30] sm:$0xff]
        %v350 = vld [vmem:[%s3 + $0x38] sm:$0xff]
        %352 = vset.pattern.permute.xlu0 0
        %353 = vperm.xlu0 %352, %v343
        %v354 = vpop.permute.xlu0 %353
        %357 = vset.pattern.permute.xlu0 0
        %358 = vperm.xlu0 %357, %v344
        %v359 = vpop.permute.xlu0 %358
        %362 = vset.pattern.permute.xlu0 0
        %363 = vperm.xlu0 %362, %v345
        %v364 = vpop.permute.xlu0 %363
        %367 = vset.pattern.permute.xlu0 0
        %368 = vperm.xlu0 %367, %v346
        %v369 = vpop.permute.xlu0 %368
        %372 = vset.pattern.permute.xlu0 0
        %373 = vperm.xlu0 %372, %v347
        %v374 = vpop.permute.xlu0 %373
        %377 = vset.pattern.permute.xlu0 0
        %378 = vperm.xlu0 %377, %v348
        %v379 = vpop.permute.xlu0 %378
        %382 = vset.pattern.permute.xlu0 0
        %383 = vperm.xlu0 %382, %v349
        %v384 = vpop.permute.xlu0 %383
        %387 = vset.pattern.permute.xlu0 0
        %388 = vperm.xlu0 %387, %v350
        %v389 = vpop.permute.xlu0 %388
        %v399 = vunpack.c.l.b16 %v335
        %v400 = vunpack.c.l.b16 %v336
        %v401 = vunpack.c.l.b16 %v337
        %v402 = vunpack.c.l.b16 %v338
        %v403 = vunpack.c.l.b16 %v339
        %v404 = vunpack.c.l.b16 %v340
        %v405 = vunpack.c.l.b16 %v341
        %v406 = vunpack.c.l.b16 %v342
        %v407 = vpack.c.b16 %v400, %v399
        %v408 = vpack.c.b16 %v402, %v401
        %v409 = vpack.c.b16 %v404, %v403
        %v410 = vpack.c.b16 %v406, %v405
        %413 = vrot.lane.b32.xlu0 %v298, 1
        %v414 = vpop.permute.xlu0 %413
        %415 = vrot.lane.b32.xlu0 %v299, 1
        %v416 = vpop.permute.xlu0 %415
        %417 = vrot.lane.b32.xlu0 %v300, 1
        %v418 = vpop.permute.xlu0 %417
        %419 = vrot.lane.b32.xlu0 %v301, 1
        %v420 = vpop.permute.xlu0 %419
        %421 = vrot.lane.b32.xlu0 %v317, 1
        %v422 = vpop.permute.xlu0 %421
        %423 = vrot.lane.b32.xlu0 %v319, 1
        %v424 = vpop.permute.xlu0 %423
        %425 = vrot.lane.b32.xlu0 %v325, 1
        %v426 = vpop.permute.xlu0 %425
        %427 = vrot.lane.b32.xlu0 %v333, 1
        %v428 = vpop.permute.xlu0 %427
        %429 = vrot.lane.b32.xlu0 %v329, 1
        %v430 = vpop.permute.xlu0 %429
        %431 = vrot.lane.b32.xlu0 %v334, 1
        %v432 = vpop.permute.xlu0 %431
        %vm433 = vcmask 7168
        %v434 = vsel %vm433, %v414, %v416
        %v435 = vsel %vm433, %v418, %v420
        %v436 = vsel %vm433, %v426, %v428
        %v437 = vsel %vm433, %v430, %v432
        %vm444 = vcmask 785408
        %v446 = vsel %vm444, %v407, 0
        %v449 = vsel %vm444, %v408, 0
        %v452 = vsel %vm444, %v409, 0
        %v455 = vsel %vm444, %v410, 0
        %457 = vmatprep.subr.bf16.mxu0 0
        %458 = vmatpush1.bf16.msra.mxu0 0
        %459 = vmatprep.subr.bf16.mxu0 0
        %460 = vmatpush1.bf16.msra.mxu0 0
        %461 = vmatprep.subr.bf16.mxu0 0
        %462 = vmatpush1.bf16.msra.mxu0 %v437
        %463 = vmatprep.subr.bf16.mxu0 0
        %464 = vmatpush1.bf16.msra.mxu0 %v436
        %465 = vmatprep.subr.bf16.mxu0 0
        %466 = vmatpush1.bf16.msra.mxu0 %v424
        %467 = vmatprep.subr.bf16.mxu0 0
        %468 = vmatpush1.bf16.msra.mxu0 %v422
        %469 = vmatprep.subr.bf16.mxu0 0
        %470 = vmatpush1.bf16.msra.mxu0 %v435
        %471 = vmatprep.subr.bf16.mxu0 0
        %472 = vmatpush1.bf16.msra.mxu0 %v434
        %473 = vmatprep.subr.bf16.mxu0 0
        %474 = vmatpush2.bf16.msra.mxu0 0
        %475 = vmatprep.subr.bf16.mxu0 0
        %476 = vmatpush2.bf16.msra.mxu0 0
        %477 = vmatprep.subr.bf16.mxu0 0
        %478 = vmatpush2.bf16.msra.mxu0 0
        %479 = vmatprep.subr.bf16.mxu0 0
        %480 = vmatpush2.bf16.msra.mxu0 0
        %481 = vmatprep.subr.bf16.mxu0 0
        %482 = vmatpush2.bf16.msra.mxu0 0
        %483 = vmatprep.subr.bf16.mxu0 0
        %484 = vmatpush2.bf16.msra.mxu0 0
        %485 = vmatprep.subr.bf16.mxu0 0
        %486 = vmatpush2.bf16.msra.mxu0 0
        %487 = vmatprep.subr.bf16.mxu0 0
        %488 = vmatpush2.bf16.msra.mxu0 0
        %489 = vmatprep.mubr.bf16.mxu0 0
        %490 = vmatmul.mubr.bf16.gmra.mxu0 %v446
        %v491 = vpop.f32.mrf.mxu0
        %v492 = vadd.f32 %v354, %v491
        %v493 = vpop.f32.mrf.mxu0
        %v494 = vpop.f32.mrf.mxu0
        %v495 = vadd.f32 %v359, %v494
        %v496 = vpop.f32.mrf.mxu0
        %497 = vmatprep.mubr.bf16.mxu0 0
        %498 = vmatmul.mubr.bf16.gmra.mxu0 %v449
        %v499 = vpop.f32.mrf.mxu0
        %v500 = vadd.f32 %v364, %v499
        %v501 = vpop.f32.mrf.mxu0
        %v502 = vpop.f32.mrf.mxu0
        %v503 = vadd.f32 %v369, %v502
        %v504 = vpop.f32.mrf.mxu0
        %505 = vmatprep.mubr.bf16.mxu0 0
        %506 = vmatmul.mubr.bf16.gmra.mxu0 %v452
        %v507 = vpop.f32.mrf.mxu0
        %v508 = vadd.f32 %v374, %v507
        %v509 = vpop.f32.mrf.mxu0
        %v510 = vpop.f32.mrf.mxu0
        %v511 = vadd.f32 %v379, %v510
        %v512 = vpop.f32.mrf.mxu0
        %513 = vmatprep.mubr.bf16.mxu0 0
        %514 = vmatmul.mubr.bf16.gmra.mxu0 %v455
        %v515 = vpop.f32.mrf.mxu0
        %v516 = vadd.f32 %v384, %v515
        %v517 = vpop.f32.mrf.mxu0
        %v518 = vpop.f32.mrf.mxu0
        %v519 = vadd.f32 %v389, %v518
        %v520 = vpop.f32.mrf.mxu0
        %521 = vdwg.mxu0
        %v522 = vtanh.pop %v492
        %v523 = vtanh.pop %v495
        %v524 = vtanh.pop %v500
        %v525 = vtanh.pop %v503
        %v526 = vsub.f32 0.0, %v508
        %v527 = vsub.f32 0.0, %v511
        %v528 = vsub.f32 0.0, %v516
        %v529 = vsub.f32 0.0, %v519
        %v530 = vmul.f32 %v526, 1.442695
        %v531 = vpow.pop %v530
        %v532 = vmul.f32 %v527, 1.442695
        %v533 = vpow.pop %v532
        %v534 = vmul.f32 %v528, 1.442695
        %v535 = vpow.pop %v534
        %v536 = vmul.f32 %v529, 1.442695
        %v537 = vpow.pop %v536
        %v538 = vadd.f32 %v531, 1.0
        %v539 = vadd.f32 %v533, 1.0
        %v540 = vadd.f32 %v535, 1.0
        %v541 = vadd.f32 %v537, 1.0
        %v542 = vrcp.pop %v538
        %v543 = vrcp.pop %v539
        %v544 = vrcp.pop %v540
        %v545 = vrcp.pop %v541
        %v546 = vmul.f32 %v522, %v542
        %v547 = vmul.f32 %v523, %v543
        %v548 = vmul.f32 %v524, %v544
        %v549 = vmul.f32 %v525, %v545
        %v550 = vpack.c.bf16 %v547, %v546
        %v551 = vpack.c.bf16 %v549, %v548
        %v552 = vld [vmem:[%s4] sm:$0xf]
        %v553 = vld [vmem:[%s4 + $0x4] sm:$0xf]
        %v554 = vld [vmem:[%s4 + $0x8] sm:$0xf]
        %v555 = vld [vmem:[%s4 + $0xc] sm:$0xf]
        %v556 = vld [vmem:[%s4 + $0x10] sm:$0xf]
        %v557 = vld [vmem:[%s4 + $0x14] sm:$0xf]
        %v558 = vld [vmem:[%s4 + $0x18] sm:$0xf]
        %v559 = vld [vmem:[%s4 + $0x1c] sm:$0xf]
        %v560 = vld [vmem:[%s5] sm:$0xff]
        %v561 = vld [vmem:[%s5 + $0x8] sm:$0xff]
        %v562 = vld [vmem:[%s5 + $0x10] sm:$0xff]
        %v563 = vld [vmem:[%s5 + $0x18] sm:$0xff]
        %v564 = vld [vmem:[%s5 + $0x20] sm:$0xff]
        %v565 = vld [vmem:[%s5 + $0x28] sm:$0xff]
        %v566 = vld [vmem:[%s5 + $0x30] sm:$0xff]
        %v567 = vld [vmem:[%s5 + $0x38] sm:$0xff]
        %569 = vset.pattern.permute.xlu0 0
        %570 = vperm.xlu0 %569, %v560
        %v571 = vpop.permute.xlu0 %570
        %574 = vset.pattern.permute.xlu0 0
        %575 = vperm.xlu0 %574, %v561
        %v576 = vpop.permute.xlu0 %575
        %579 = vset.pattern.permute.xlu0 0
        %580 = vperm.xlu0 %579, %v562
        %v581 = vpop.permute.xlu0 %580
        %584 = vset.pattern.permute.xlu0 0
        %585 = vperm.xlu0 %584, %v563
        %v586 = vpop.permute.xlu0 %585
        %589 = vset.pattern.permute.xlu0 0
        %590 = vperm.xlu0 %589, %v564
        %v591 = vpop.permute.xlu0 %590
        %594 = vset.pattern.permute.xlu0 0
        %595 = vperm.xlu0 %594, %v565
        %v596 = vpop.permute.xlu0 %595
        %599 = vset.pattern.permute.xlu0 0
        %600 = vperm.xlu0 %599, %v566
        %v601 = vpop.permute.xlu0 %600
        %604 = vset.pattern.permute.xlu0 0
        %605 = vperm.xlu0 %604, %v567
        %v606 = vpop.permute.xlu0 %605
        %v616 = vunpack.c.l.b16 %v552
        %v617 = vunpack.c.l.b16 %v553
        %v618 = vunpack.c.l.b16 %v554
        %v619 = vunpack.c.l.b16 %v555
        %v620 = vunpack.c.l.b16 %v556
        %v621 = vunpack.c.l.b16 %v557
        %v622 = vunpack.c.l.b16 %v558
        %v623 = vunpack.c.l.b16 %v559
        %v624 = vpack.c.b16 %v617, %v616
        %v625 = vpack.c.b16 %v619, %v618
        %v626 = vpack.c.b16 %v621, %v620
        %v627 = vpack.c.b16 %v623, %v622
        %vm628 = vcmask 261120
        %v630 = vsel %vm628, %v624, 0
        %v633 = vsel %vm628, %v625, 0
        %v636 = vsel %vm628, %v626, 0
        %v639 = vsel %vm628, %v627, 0
        %641 = vmatprep.subr.bf16.mxu0 0
        %642 = vmatpush1.bf16.msra.mxu0 0
        %643 = vmatprep.subr.bf16.mxu0 0
        %644 = vmatpush1.bf16.msra.mxu0 0
        %645 = vmatprep.subr.bf16.mxu0 0
        %646 = vmatpush1.bf16.msra.mxu0 0
        %647 = vmatprep.subr.bf16.mxu0 0
        %648 = vmatpush1.bf16.msra.mxu0 0
        %649 = vmatprep.subr.bf16.mxu0 0
        %650 = vmatpush1.bf16.msra.mxu0 0
        %651 = vmatprep.subr.bf16.mxu0 0
        %652 = vmatpush1.bf16.msra.mxu0 0
        %653 = vmatprep.subr.bf16.mxu0 0
        %654 = vmatpush1.bf16.msra.mxu0 %v551
        %655 = vmatprep.subr.bf16.mxu0 0
        %656 = vmatpush1.bf16.msra.mxu0 %v550
        %657 = vmatprep.subr.bf16.mxu0 0
        %658 = vmatpush2.bf16.msra.mxu0 0
        %659 = vmatprep.subr.bf16.mxu0 0
        %660 = vmatpush2.bf16.msra.mxu0 0
        %661 = vmatprep.subr.bf16.mxu0 0
        %662 = vmatpush2.bf16.msra.mxu0 0
        %663 = vmatprep.subr.bf16.mxu0 0
        %664 = vmatpush2.bf16.msra.mxu0 0
        %665 = vmatprep.subr.bf16.mxu0 0
        %666 = vmatpush2.bf16.msra.mxu0 0
        %667 = vmatprep.subr.bf16.mxu0 0
        %668 = vmatpush2.bf16.msra.mxu0 0
        %669 = vmatprep.subr.bf16.mxu0 0
        %670 = vmatpush2.bf16.msra.mxu0 0
        %671 = vmatprep.subr.bf16.mxu0 0
        %672 = vmatpush2.bf16.msra.mxu0 0
        %673 = vmatprep.mubr.bf16.mxu0 0
        %674 = vmatmul.mubr.bf16.gmra.mxu0 %v630
        %v675 = vpop.f32.mrf.mxu0
        %v676 = vadd.f32 %v571, %v675
        %v677 = vpop.f32.mrf.mxu0
        %v678 = vpop.f32.mrf.mxu0
        %v679 = vadd.f32 %v576, %v678
        %v680 = vpop.f32.mrf.mxu0
        %681 = vmatprep.mubr.bf16.mxu0 0
        %682 = vmatmul.mubr.bf16.gmra.mxu0 %v633
        %v683 = vpop.f32.mrf.mxu0
        %v684 = vadd.f32 %v581, %v683
        %v685 = vpop.f32.mrf.mxu0
        %v686 = vpop.f32.mrf.mxu0
        %v687 = vadd.f32 %v586, %v686
        %v688 = vpop.f32.mrf.mxu0
        %689 = vmatprep.mubr.bf16.mxu0 0
        %690 = vmatmul.mubr.bf16.gmra.mxu0 %v636
        %v691 = vpop.f32.mrf.mxu0
        %v692 = vadd.f32 %v591, %v691
        %v693 = vpop.f32.mrf.mxu0
        %v694 = vpop.f32.mrf.mxu0
        %v695 = vadd.f32 %v596, %v694
        %v696 = vpop.f32.mrf.mxu0
        %697 = vmatprep.mubr.bf16.mxu0 0
        %698 = vmatmul.mubr.bf16.gmra.mxu0 %v639
        %v699 = vpop.f32.mrf.mxu0
        %v700 = vadd.f32 %v601, %v699
        %v701 = vpop.f32.mrf.mxu0
        %v702 = vpop.f32.mrf.mxu0
        %v703 = vadd.f32 %v606, %v702
        %v704 = vpop.f32.mrf.mxu0
        %705 = vdwg.mxu0
        %v706 = vadd.f32 %v291, %v676
        %v707 = vadd.f32 %v293, %v679
        %v708 = vadd.f32 %v295, %v684
        %v709 = vadd.f32 %v297, %v687
        %v711 = vlaneseq
        %v712 = vshrl.u32 %v711, 7
        %v713 = vsub.s32 0, %v712
        %v714 = vrot.slane %v289, %v713
        %v716 = vmul.f32 %v706, %v714
        %v717 = vmul.f32 %v707, %v714
        %v718 = vmul.f32 %v708, %v714
        %v719 = vmul.f32 %v709, %v714
        %720 = vst [vmem:[#allocation2 + $0x8] sm:$0xff] %v716
        %721 = vst [vmem:[#allocation2 + $0x20] sm:$0xff] %v717
        %722 = vst [vmem:[#allocation2 + $0x38] sm:$0xff] %v718
        %723 = vst [vmem:[#allocation2 + $0x50] sm:$0xff] %v719
        %v724 = vadd.f32 %v692, 0.0
        %v725 = vadd.f32 %v695, 0.0
        %v726 = vadd.f32 %v700, 0.0
        %v727 = vadd.f32 %v703, 0.0
        %v728 = vld [vmem:[#allocation2] sm:$0xff]
        %v729 = vld [vmem:[#allocation2 + $0x8] sm:$0xff]
        %v730 = vld [vmem:[#allocation2 + $0x18] sm:$0xff]
        %v731 = vld [vmem:[#allocation2 + $0x20] sm:$0xff]
        %v732 = vld [vmem:[#allocation2 + $0x30] sm:$0xff]
        %v733 = vld [vmem:[#allocation2 + $0x38] sm:$0xff]
        %v734 = vld [vmem:[#allocation2 + $0x48] sm:$0xff]
        %v735 = vld [vmem:[#allocation2 + $0x50] sm:$0xff]
        %v736 = vpack.c.bf16 %v730, %v728
        %v737 = vpack.c.bf16 %v731, %v729
        %v738 = vpack.c.bf16 %v734, %v732
        %v739 = vpack.c.bf16 %v735, %v733
        %v740 = vld [vmem:[#allocation2 + $0x8] sm:$0xff]
        %v741 = vld [vmem:[#allocation2 + $0x10] sm:$0xff]
        %v742 = vld [vmem:[#allocation2 + $0x20] sm:$0xff]
        %v743 = vld [vmem:[#allocation2 + $0x28] sm:$0xff]
        %v744 = vld [vmem:[#allocation2 + $0x38] sm:$0xff]
        %v745 = vld [vmem:[#allocation2 + $0x40] sm:$0xff]
        %v746 = vld [vmem:[#allocation2 + $0x50] sm:$0xff]
        %v747 = vld [vmem:[#allocation2 + $0x58] sm:$0xff]
        %v748 = vpack.c.bf16 %v742, %v740
        %v749 = vpack.c.bf16 %v743, %v741
        %v750 = vpack.c.bf16 %v746, %v744
        %v751 = vpack.c.bf16 %v747, %v745
        %754 = vrot.lane.b32.xlu0 %v737, 126
        %v755 = vpop.permute.xlu0 %754
        %756 = vrot.lane.b32.xlu0 %v739, 126
        %v757 = vpop.permute.xlu0 %756
        %762 = vrot.lane.b32.xlu0 %v748, 124
        %v763 = vpop.permute.xlu0 %762
        %764 = vrot.lane.b32.xlu0 %v749, 124
        %v765 = vpop.permute.xlu0 %764
        %766 = vrot.lane.b32.xlu0 %v750, 124
        %v767 = vpop.permute.xlu0 %766
        %768 = vrot.lane.b32.xlu0 %v751, 124
        %v769 = vpop.permute.xlu0 %768
        %vm770 = vcmask 1014784
        %v771 = vsel %vm770, %v763, %v765
        %v772 = vsel %vm770, %v767, %v769
        %s773 = scalar_lea.vmem %s2, 32
        %v774 = vld [vmem:[%s773] sm:$0xf]
        %v775 = vld [vmem:[%s773 + $0x4] sm:$0xf]
        %v776 = vld [vmem:[%s773 + $0x8] sm:$0xf]
        %v777 = vld [vmem:[%s773 + $0xc] sm:$0xf]
        %v778 = vld [vmem:[%s773 + $0x10] sm:$0xf]
        %v779 = vld [vmem:[%s773 + $0x14] sm:$0xf]
        %v780 = vld [vmem:[%s773 + $0x18] sm:$0xf]
        %v781 = vld [vmem:[%s773 + $0x1c] sm:$0xf]
        %s782 = scalar_lea.vmem %s3, 64
        %v783 = vld [vmem:[%s782] sm:$0xff]
        %v784 = vld [vmem:[%s782 + $0x8] sm:$0xff]
        %v785 = vld [vmem:[%s782 + $0x10] sm:$0xff]
        %v786 = vld [vmem:[%s782 + $0x18] sm:$0xff]
        %v787 = vld [vmem:[%s782 + $0x20] sm:$0xff]
        %v788 = vld [vmem:[%s782 + $0x28] sm:$0xff]
        %v789 = vld [vmem:[%s782 + $0x30] sm:$0xff]
        %v790 = vld [vmem:[%s782 + $0x38] sm:$0xff]
        %792 = vset.pattern.permute.xlu0 0
        %793 = vperm.xlu0 %792, %v783
        %v794 = vpop.permute.xlu0 %793
        %797 = vset.pattern.permute.xlu0 0
        %798 = vperm.xlu0 %797, %v784
        %v799 = vpop.permute.xlu0 %798
        %802 = vset.pattern.permute.xlu0 0
        %803 = vperm.xlu0 %802, %v785
        %v804 = vpop.permute.xlu0 %803
        %807 = vset.pattern.permute.xlu0 0
        %808 = vperm.xlu0 %807, %v786
        %v809 = vpop.permute.xlu0 %808
        %812 = vset.pattern.permute.xlu0 0
        %813 = vperm.xlu0 %812, %v787
        %v814 = vpop.permute.xlu0 %813
        %817 = vset.pattern.permute.xlu0 0
        %818 = vperm.xlu0 %817, %v788
        %v819 = vpop.permute.xlu0 %818
        %822 = vset.pattern.permute.xlu0 0
        %823 = vperm.xlu0 %822, %v789
        %v824 = vpop.permute.xlu0 %823
        %827 = vset.pattern.permute.xlu0 0
        %828 = vperm.xlu0 %827, %v790
        %v829 = vpop.permute.xlu0 %828
        %v839 = vunpack.c.l.b16 %v774
        %v840 = vunpack.c.l.b16 %v775
        %v841 = vunpack.c.l.b16 %v776
        %v842 = vunpack.c.l.b16 %v777
        %v843 = vunpack.c.l.b16 %v778
        %v844 = vunpack.c.l.b16 %v779
        %v845 = vunpack.c.l.b16 %v780
        %v846 = vunpack.c.l.b16 %v781
        %v847 = vpack.c.b16 %v840, %v839
        %v848 = vpack.c.b16 %v842, %v841
        %v849 = vpack.c.b16 %v844, %v843
        %v850 = vpack.c.b16 %v846, %v845
        %853 = vrot.lane.b32.xlu0 %v736, 2
        %v854 = vpop.permute.xlu0 %853
        %855 = vrot.lane.b32.xlu0 %v737, 2
        %v856 = vpop.permute.xlu0 %855
        %857 = vrot.lane.b32.xlu0 %v738, 2
        %v858 = vpop.permute.xlu0 %857
        %859 = vrot.lane.b32.xlu0 %v739, 2
        %v860 = vpop.permute.xlu0 %859
        %861 = vrot.lane.b32.xlu0 %v755, 2
        %v862 = vpop.permute.xlu0 %861
        %863 = vrot.lane.b32.xlu0 %v757, 2
        %v864 = vpop.permute.xlu0 %863
        %865 = vrot.lane.b32.xlu0 %v763, 2
        %v866 = vpop.permute.xlu0 %865
        %867 = vrot.lane.b32.xlu0 %v771, 2
        %v868 = vpop.permute.xlu0 %867
        %869 = vrot.lane.b32.xlu0 %v767, 2
        %v870 = vpop.permute.xlu0 %869
        %871 = vrot.lane.b32.xlu0 %v772, 2
        %v872 = vpop.permute.xlu0 %871
        %vm873 = vcmask 15360
        %v874 = vsel %vm873, %v854, %v856
        %v875 = vsel %vm873, %v858, %v860
        %v876 = vsel %vm873, %v866, %v868
        %v877 = vsel %vm873, %v870, %v872
        %v885 = vsel %vm444, %v847, 0
        %v888 = vsel %vm444, %v848, 0
        %v891 = vsel %vm444, %v849, 0
        %v894 = vsel %vm444, %v850, 0
        %896 = vmatprep.subr.bf16.mxu0 0
        %897 = vmatpush1.bf16.msra.mxu0 0
        %898 = vmatprep.subr.bf16.mxu0 0
        %899 = vmatpush1.bf16.msra.mxu0 0
        %900 = vmatprep.subr.bf16.mxu0 0
        %901 = vmatpush1.bf16.msra.mxu0 %v877
        %902 = vmatprep.subr.bf16.mxu0 0
        %903 = vmatpush1.bf16.msra.mxu0 %v876
        %904 = vmatprep.subr.bf16.mxu0 0
        %905 = vmatpush1.bf16.msra.mxu0 %v864
        %906 = vmatprep.subr.bf16.mxu0 0
        %907 = vmatpush1.bf16.msra.mxu0 %v862
        %908 = vmatprep.subr.bf16.mxu0 0
        %909 = vmatpush1.bf16.msra.mxu0 %v875
        %910 = vmatprep.subr.bf16.mxu0 0
        %911 = vmatpush1.bf16.msra.mxu0 %v874
        %912 = vmatprep.subr.bf16.mxu0 0
        %913 = vmatpush2.bf16.msra.mxu0 0
        %914 = vmatprep.subr.bf16.mxu0 0
        %915 = vmatpush2.bf16.msra.mxu0 0
        %916 = vmatprep.subr.bf16.mxu0 0
        %917 = vmatpush2.bf16.msra.mxu0 0
        %918 = vmatprep.subr.bf16.mxu0 0
        %919 = vmatpush2.bf16.msra.mxu0 0
        %920 = vmatprep.subr.bf16.mxu0 0
        %921 = vmatpush2.bf16.msra.mxu0 0
        %922 = vmatprep.subr.bf16.mxu0 0
        %923 = vmatpush2.bf16.msra.mxu0 0
        %924 = vmatprep.subr.bf16.mxu0 0
        %925 = vmatpush2.bf16.msra.mxu0 0
        %926 = vmatprep.subr.bf16.mxu0 0
        %927 = vmatpush2.bf16.msra.mxu0 0
        %928 = vmatprep.mubr.bf16.mxu0 0
        %929 = vmatmul.mubr.bf16.gmra.mxu0 %v885
        %v930 = vpop.f32.mrf.mxu0
        %v931 = vadd.f32 %v794, %v930
        %v932 = vpop.f32.mrf.mxu0
        %v933 = vpop.f32.mrf.mxu0
        %v934 = vadd.f32 %v799, %v933
        %v935 = vpop.f32.mrf.mxu0
        %936 = vmatprep.mubr.bf16.mxu0 0
        %937 = vmatmul.mubr.bf16.gmra.mxu0 %v888
        %v938 = vpop.f32.mrf.mxu0
        %v939 = vadd.f32 %v804, %v938
        %v940 = vpop.f32.mrf.mxu0
        %v941 = vpop.f32.mrf.mxu0
        %v942 = vadd.f32 %v809, %v941
        %v943 = vpop.f32.mrf.mxu0
        %944 = vmatprep.mubr.bf16.mxu0 0
        %945 = vmatmul.mubr.bf16.gmra.mxu0 %v891
        %v946 = vpop.f32.mrf.mxu0
        %v947 = vadd.f32 %v814, %v946
        %v948 = vpop.f32.mrf.mxu0
        %v949 = vpop.f32.mrf.mxu0
        %v950 = vadd.f32 %v819, %v949
        %v951 = vpop.f32.mrf.mxu0
        %952 = vmatprep.mubr.bf16.mxu0 0
        %953 = vmatmul.mubr.bf16.gmra.mxu0 %v894
        %v954 = vpop.f32.mrf.mxu0
        %v955 = vadd.f32 %v824, %v954
        %v956 = vpop.f32.mrf.mxu0
        %v957 = vpop.f32.mrf.mxu0
        %v958 = vadd.f32 %v829, %v957
        %v959 = vpop.f32.mrf.mxu0
        %960 = vdwg.mxu0
        %v961 = vtanh.pop %v931
        %v962 = vtanh.pop %v934
        %v963 = vtanh.pop %v939
        %v964 = vtanh.pop %v942
        %v965 = vsub.f32 0.0, %v947
        %v966 = vsub.f32 0.0, %v950
        %v967 = vsub.f32 0.0, %v955
        %v968 = vsub.f32 0.0, %v958
        %v969 = vmul.f32 %v965, 1.442695
        %v970 = vpow.pop %v969
        %v971 = vmul.f32 %v966, 1.442695
        %v972 = vpow.pop %v971
        %v973 = vmul.f32 %v967, 1.442695
        %v974 = vpow.pop %v973
        %v975 = vmul.f32 %v968, 1.442695
        %v976 = vpow.pop %v975
        %v977 = vadd.f32 %v970, 1.0
        %v978 = vadd.f32 %v972, 1.0
        %v979 = vadd.f32 %v974, 1.0
        %v980 = vadd.f32 %v976, 1.0
        %v981 = vrcp.pop %v977
        %v982 = vrcp.pop %v978
        %v983 = vrcp.pop %v979
        %v984 = vrcp.pop %v980
        %v985 = vmul.f32 %v961, %v981
        %v986 = vmul.f32 %v962, %v982
        %v987 = vmul.f32 %v963, %v983
        %v988 = vmul.f32 %v964, %v984
        %v989 = vpack.c.bf16 %v986, %v985
        %v990 = vpack.c.bf16 %v988, %v987
        %s991 = scalar_lea.vmem %s4, 32
        %v992 = vld [vmem:[%s991] sm:$0xf]
        %v993 = vld [vmem:[%s991 + $0x4] sm:$0xf]
        %v994 = vld [vmem:[%s991 + $0x8] sm:$0xf]
        %v995 = vld [vmem:[%s991 + $0xc] sm:$0xf]
        %v996 = vld [vmem:[%s991 + $0x10] sm:$0xf]
        %v997 = vld [vmem:[%s991 + $0x14] sm:$0xf]
        %v998 = vld [vmem:[%s991 + $0x18] sm:$0xf]
        %v999 = vld [vmem:[%s991 + $0x1c] sm:$0xf]
        %s1000 = scalar_lea.vmem %s5, 64
        %v1001 = vld [vmem:[%s1000] sm:$0xff]
        %v1002 = vld [vmem:[%s1000 + $0x8] sm:$0xff]
        %v1003 = vld [vmem:[%s1000 + $0x10] sm:$0xff]
        %v1004 = vld [vmem:[%s1000 + $0x18] sm:$0xff]
        %v1005 = vld [vmem:[%s1000 + $0x20] sm:$0xff]
        %v1006 = vld [vmem:[%s1000 + $0x28] sm:$0xff]
        %v1007 = vld [vmem:[%s1000 + $0x30] sm:$0xff]
        %v1008 = vld [vmem:[%s1000 + $0x38] sm:$0xff]
        %1010 = vset.pattern.permute.xlu0 0
        %1011 = vperm.xlu0 %1010, %v1001
        %v1012 = vpop.permute.xlu0 %1011
        %1015 = vset.pattern.permute.xlu0 0
        %1016 = vperm.xlu0 %1015, %v1002
        %v1017 = vpop.permute.xlu0 %1016
        %1020 = vset.pattern.permute.xlu0 0
        %1021 = vperm.xlu0 %1020, %v1003
        %v1022 = vpop.permute.xlu0 %1021
        %1025 = vset.pattern.permute.xlu0 0
        %1026 = vperm.xlu0 %1025, %v1004
        %v1027 = vpop.permute.xlu0 %1026
        %1030 = vset.pattern.permute.xlu0 0
        %1031 = vperm.xlu0 %1030, %v1005
        %v1032 = vpop.permute.xlu0 %1031
        %1035 = vset.pattern.permute.xlu0 0
        %1036 = vperm.xlu0 %1035, %v1006
        %v1037 = vpop.permute.xlu0 %1036
        %1040 = vset.pattern.permute.xlu0 0
        %1041 = vperm.xlu0 %1040, %v1007
        %v1042 = vpop.permute.xlu0 %1041
        %1045 = vset.pattern.permute.xlu0 0
        %1046 = vperm.xlu0 %1045, %v1008
        %v1047 = vpop.permute.xlu0 %1046
        %v1057 = vunpack.c.l.b16 %v992
        %v1058 = vunpack.c.l.b16 %v993
        %v1059 = vunpack.c.l.b16 %v994
        %v1060 = vunpack.c.l.b16 %v995
        %v1061 = vunpack.c.l.b16 %v996
        %v1062 = vunpack.c.l.b16 %v997
        %v1063 = vunpack.c.l.b16 %v998
        %v1064 = vunpack.c.l.b16 %v999
        %v1065 = vpack.c.b16 %v1058, %v1057
        %v1066 = vpack.c.b16 %v1060, %v1059
        %v1067 = vpack.c.b16 %v1062, %v1061
        %v1068 = vpack.c.b16 %v1064, %v1063
        %v1070 = vsel %vm628, %v1065, 0
        %v1073 = vsel %vm628, %v1066, 0
        %v1076 = vsel %vm628, %v1067, 0
        %v1079 = vsel %vm628, %v1068, 0
        %1081 = vmatprep.subr.bf16.mxu0 0
        %1082 = vmatpush1.bf16.msra.mxu0 0
        %1083 = vmatprep.subr.bf16.mxu0 0
        %1084 = vmatpush1.bf16.msra.mxu0 0
        %1085 = vmatprep.subr.bf16.mxu0 0
        %1086 = vmatpush1.bf16.msra.mxu0 0
        %1087 = vmatprep.subr.bf16.mxu0 0
        %1088 = vmatpush1.bf16.msra.mxu0 0
        %1089 = vmatprep.subr.bf16.mxu0 0
        %1090 = vmatpush1.bf16.msra.mxu0 0
        %1091 = vmatprep.subr.bf16.mxu0 0
        %1092 = vmatpush1.bf16.msra.mxu0 0
        %1093 = vmatprep.subr.bf16.mxu0 0
        %1094 = vmatpush1.bf16.msra.mxu0 %v990
        %1095 = vmatprep.subr.bf16.mxu0 0
        %1096 = vmatpush1.bf16.msra.mxu0 %v989
        %1097 = vmatprep.subr.bf16.mxu0 0
        %1098 = vmatpush2.bf16.msra.mxu0 0
        %1099 = vmatprep.subr.bf16.mxu0 0
        %1100 = vmatpush2.bf16.msra.mxu0 0
        %1101 = vmatprep.subr.bf16.mxu0 0
        %1102 = vmatpush2.bf16.msra.mxu0 0
        %1103 = vmatprep.subr.bf16.mxu0 0
        %1104 = vmatpush2.bf16.msra.mxu0 0
        %1105 = vmatprep.subr.bf16.mxu0 0
        %1106 = vmatpush2.bf16.msra.mxu0 0
        %1107 = vmatprep.subr.bf16.mxu0 0
        %1108 = vmatpush2.bf16.msra.mxu0 0
        %1109 = vmatprep.subr.bf16.mxu0 0
        %1110 = vmatpush2.bf16.msra.mxu0 0
        %1111 = vmatprep.subr.bf16.mxu0 0
        %1112 = vmatpush2.bf16.msra.mxu0 0
        %1113 = vmatprep.mubr.bf16.mxu0 0
        %1114 = vmatmul.mubr.bf16.gmra.mxu0 %v1070
        %v1115 = vpop.f32.mrf.mxu0
        %v1116 = vadd.f32 %v1012, %v1115
        %v1117 = vpop.f32.mrf.mxu0
        %v1118 = vpop.f32.mrf.mxu0
        %v1119 = vadd.f32 %v1017, %v1118
        %v1120 = vpop.f32.mrf.mxu0
        %1121 = vmatprep.mubr.bf16.mxu0 0
        %1122 = vmatmul.mubr.bf16.gmra.mxu0 %v1073
        %v1123 = vpop.f32.mrf.mxu0
        %v1124 = vadd.f32 %v1022, %v1123
        %v1125 = vpop.f32.mrf.mxu0
        %v1126 = vpop.f32.mrf.mxu0
        %v1127 = vadd.f32 %v1027, %v1126
        %v1128 = vpop.f32.mrf.mxu0
        %1129 = vmatprep.mubr.bf16.mxu0 0
        %1130 = vmatmul.mubr.bf16.gmra.mxu0 %v1076
        %v1131 = vpop.f32.mrf.mxu0
        %v1132 = vadd.f32 %v1032, %v1131
        %v1133 = vpop.f32.mrf.mxu0
        %v1134 = vpop.f32.mrf.mxu0
        %v1135 = vadd.f32 %v1037, %v1134
        %v1136 = vpop.f32.mrf.mxu0
        %1137 = vmatprep.mubr.bf16.mxu0 0
        %1138 = vmatmul.mubr.bf16.gmra.mxu0 %v1079
        %v1139 = vpop.f32.mrf.mxu0
        %v1140 = vadd.f32 %v1042, %v1139
        %v1141 = vpop.f32.mrf.mxu0
        %v1142 = vpop.f32.mrf.mxu0
        %v1143 = vadd.f32 %v1047, %v1142
        %v1144 = vpop.f32.mrf.mxu0
        %1145 = vdwg.mxu0
        %v1146 = vadd.f32 %v729, %v1116
        %v1147 = vadd.f32 %v731, %v1119
        %v1148 = vadd.f32 %v733, %v1124
        %v1149 = vadd.f32 %v735, %v1127
        %v1150 = vmul.f32 %v1146, %v714
        %v1151 = vmul.f32 %v1147, %v714
        %v1152 = vmul.f32 %v1148, %v714
        %v1153 = vmul.f32 %v1149, %v714
        %1154 = vst [vmem:[#allocation2 + $0x8] sm:$0xff] %v1150
        %1155 = vst [vmem:[#allocation2 + $0x20] sm:$0xff] %v1151
        %1156 = vst [vmem:[#allocation2 + $0x38] sm:$0xff] %v1152
        %1157 = vst [vmem:[#allocation2 + $0x50] sm:$0xff] %v1153
        %v1158 = vadd.f32 %v724, %v1132
        %v1159 = vadd.f32 %v725, %v1135
        %v1160 = vadd.f32 %v726, %v1140
        %v1161 = vadd.f32 %v727, %v1143
        %v1162 = vld [vmem:[#allocation2] sm:$0xff]
        %v1163 = vld [vmem:[#allocation2 + $0x8] sm:$0xff]
        %v1164 = vld [vmem:[#allocation2 + $0x18] sm:$0xff]
        %v1165 = vld [vmem:[#allocation2 + $0x20] sm:$0xff]
        %v1166 = vld [vmem:[#allocation2 + $0x30] sm:$0xff]
        %v1167 = vld [vmem:[#allocation2 + $0x38] sm:$0xff]
        %v1168 = vld [vmem:[#allocation2 + $0x48] sm:$0xff]
        %v1169 = vld [vmem:[#allocation2 + $0x50] sm:$0xff]
        %v1170 = vpack.c.bf16 %v1164, %v1162
        %v1171 = vpack.c.bf16 %v1165, %v1163
        %v1172 = vpack.c.bf16 %v1168, %v1166
        %v1173 = vpack.c.bf16 %v1169, %v1167
        %v1174 = vld [vmem:[#allocation2 + $0x8] sm:$0xff]
        %v1175 = vld [vmem:[#allocation2 + $0x10] sm:$0xff]
        %v1176 = vld [vmem:[#allocation2 + $0x20] sm:$0xff]
        %v1177 = vld [vmem:[#allocation2 + $0x28] sm:$0xff]
        %v1178 = vld [vmem:[#allocation2 + $0x38] sm:$0xff]
        %v1179 = vld [vmem:[#allocation2 + $0x40] sm:$0xff]
        %v1180 = vld [vmem:[#allocation2 + $0x50] sm:$0xff]
        %v1181 = vld [vmem:[#allocation2 + $0x58] sm:$0xff]
        %v1182 = vpack.c.bf16 %v1176, %v1174
        %v1183 = vpack.c.bf16 %v1177, %v1175
        %v1184 = vpack.c.bf16 %v1180, %v1178
        %v1185 = vpack.c.bf16 %v1181, %v1179
        %1188 = vrot.lane.b32.xlu0 %v1171, 124
        %v1189 = vpop.permute.xlu0 %1188
        %1190 = vrot.lane.b32.xlu0 %v1173, 124
        %v1191 = vpop.permute.xlu0 %1190
        %1196 = vrot.lane.b32.xlu0 %v1182, 120
        %v1197 = vpop.permute.xlu0 %1196
        %1198 = vrot.lane.b32.xlu0 %v1183, 120
        %v1199 = vpop.permute.xlu0 %1198
        %1200 = vrot.lane.b32.xlu0 %v1184, 120
        %v1201 = vpop.permute.xlu0 %1200
        %1202 = vrot.lane.b32.xlu0 %v1185, 120
        %v1203 = vpop.permute.xlu0 %1202
        %vm1204 = vcmask 982016
        %v1205 = vsel %vm1204, %v1197, %v1199
        %v1206 = vsel %vm1204, %v1201, %v1203
        %s1207 = scalar_lea.vmem %s2, 64
        %v1208 = vld [vmem:[%s1207] sm:$0xf]
        %v1209 = vld [vmem:[%s1207 + $0x4] sm:$0xf]
        %v1210 = vld [vmem:[%s1207 + $0x8] sm:$0xf]
        %v1211 = vld [vmem:[%s1207 + $0xc] sm:$0xf]
        %v1212 = vld [vmem:[%s1207 + $0x10] sm:$0xf]
        %v1213 = vld [vmem:[%s1207 + $0x14] sm:$0xf]
        %v1214 = vld [vmem:[%s1207 + $0x18] sm:$0xf]
        %v1215 = vld [vmem:[%s1207 + $0x1c] sm:$0xf]
        %s1216 = scalar_lea.vmem %s3, 128
        %v1217 = vld [vmem:[%s1216] sm:$0xff]
        %v1218 = vld [vmem:[%s1216 + $0x8] sm:$0xff]
        %v1219 = vld [vmem:[%s1216 + $0x10] sm:$0xff]
        %v1220 = vld [vmem:[%s1216 + $0x18] sm:$0xff]
        %v1221 = vld [vmem:[%s1216 + $0x20] sm:$0xff]
        %v1222 = vld [vmem:[%s1216 + $0x28] sm:$0xff]
        %v1223 = vld [vmem:[%s1216 + $0x30] sm:$0xff]
        %v1224 = vld [vmem:[%s1216 + $0x38] sm:$0xff]
        %1226 = vset.pattern.permute.xlu0 0
        %1227 = vperm.xlu0 %1226, %v1217
        %v1228 = vpop.permute.xlu0 %1227
        %1231 = vset.pattern.permute.xlu0 0
        %1232 = vperm.xlu0 %1231, %v1218
        %v1233 = vpop.permute.xlu0 %1232
        %1236 = vset.pattern.permute.xlu0 0
        %1237 = vperm.xlu0 %1236, %v1219
        %v1238 = vpop.permute.xlu0 %1237
        %1241 = vset.pattern.permute.xlu0 0
        %1242 = vperm.xlu0 %1241, %v1220
        %v1243 = vpop.permute.xlu0 %1242
        %1246 = vset.pattern.permute.xlu0 0
        %1247 = vperm.xlu0 %1246, %v1221
        %v1248 = vpop.permute.xlu0 %1247
        %1251 = vset.pattern.permute.xlu0 0
        %1252 = vperm.xlu0 %1251, %v1222
        %v1253 = vpop.permute.xlu0 %1252
        %1256 = vset.pattern.permute.xlu0 0
        %1257 = vperm.xlu0 %1256, %v1223
        %v1258 = vpop.permute.xlu0 %1257
        %1261 = vset.pattern.permute.xlu0 0
        %1262 = vperm.xlu0 %1261, %v1224
        %v1263 = vpop.permute.xlu0 %1262
        %v1273 = vunpack.c.l.b16 %v1208
        %v1274 = vunpack.c.l.b16 %v1209
        %v1275 = vunpack.c.l.b16 %v1210
        %v1276 = vunpack.c.l.b16 %v1211
        %v1277 = vunpack.c.l.b16 %v1212
        %v1278 = vunpack.c.l.b16 %v1213
        %v1279 = vunpack.c.l.b16 %v1214
        %v1280 = vunpack.c.l.b16 %v1215
        %v1281 = vpack.c.b16 %v1274, %v1273
        %v1282 = vpack.c.b16 %v1276, %v1275
        %v1283 = vpack.c.b16 %v1278, %v1277
        %v1284 = vpack.c.b16 %v1280, %v1279
        %1287 = vrot.lane.b32.xlu0 %v1170, 4
        %v1288 = vpop.permute.xlu0 %1287
        %1289 = vrot.lane.b32.xlu0 %v1171, 4
        %v1290 = vpop.permute.xlu0 %1289
        %1291 = vrot.lane.b32.xlu0 %v1172, 4
        %v1292 = vpop.permute.xlu0 %1291
        %1293 = vrot.lane.b32.xlu0 %v1173, 4
        %v1294 = vpop.permute.xlu0 %1293
        %1295 = vrot.lane.b32.xlu0 %v1189, 4
        %v1296 = vpop.permute.xlu0 %1295
        %1297 = vrot.lane.b32.xlu0 %v1191, 4
        %v1298 = vpop.permute.xlu0 %1297
        %1299 = vrot.lane.b32.xlu0 %v1197, 4
        %v1300 = vpop.permute.xlu0 %1299
        %1301 = vrot.lane.b32.xlu0 %v1205, 4
        %v1302 = vpop.permute.xlu0 %1301
        %1303 = vrot.lane.b32.xlu0 %v1201, 4
        %v1304 = vpop.permute.xlu0 %1303
        %1305 = vrot.lane.b32.xlu0 %v1206, 4
        %v1306 = vpop.permute.xlu0 %1305
        %vm1307 = vcmask 31744
        %v1308 = vsel %vm1307, %v1288, %v1290
        %v1309 = vsel %vm1307, %v1292, %v1294
        %v1310 = vsel %vm1307, %v1300, %v1302
        %v1311 = vsel %vm1307, %v1304, %v1306
        %v1319 = vsel %vm444, %v1281, 0
        %v1322 = vsel %vm444, %v1282, 0
        %v1325 = vsel %vm444, %v1283, 0
        %v1328 = vsel %vm444, %v1284, 0
        %1330 = vmatprep.subr.bf16.mxu0 0
        %1331 = vmatpush1.bf16.msra.mxu0 0
        %1332 = vmatprep.subr.bf16.mxu0 0
        %1333 = vmatpush1.bf16.msra.mxu0 0
        %1334 = vmatprep.subr.bf16.mxu0 0
        %1335 = vmatpush1.bf16.msra.mxu0 %v1311
        %1336 = vmatprep.subr.bf16.mxu0 0
        %1337 = vmatpush1.bf16.msra.mxu0 %v1310
        %1338 = vmatprep.subr.bf16.mxu0 0
        %1339 = vmatpush1.bf16.msra.mxu0 %v1298
        %1340 = vmatprep.subr.bf16.mxu0 0
        %1341 = vmatpush1.bf16.msra.mxu0 %v1296
        %1342 = vmatprep.subr.bf16.mxu0 0
        %1343 = vmatpush1.bf16.msra.mxu0 %v1309
        %1344 = vmatprep.subr.bf16.mxu0 0
        %1345 = vmatpush1.bf16.msra.mxu0 %v1308
        %1346 = vmatprep.subr.bf16.mxu0 0
        %1347 = vmatpush2.bf16.msra.mxu0 0
        %1348 = vmatprep.subr.bf16.mxu0 0
        %1349 = vmatpush2.bf16.msra.mxu0 0
        %1350 = vmatprep.subr.bf16.mxu0 0
        %1351 = vmatpush2.bf16.msra.mxu0 0
        %1352 = vmatprep.subr.bf16.mxu0 0
        %1353 = vmatpush2.bf16.msra.mxu0 0
        %1354 = vmatprep.subr.bf16.mxu0 0
        %1355 = vmatpush2.bf16.msra.mxu0 0
        %1356 = vmatprep.subr.bf16.mxu0 0
        %1357 = vmatpush2.bf16.msra.mxu0 0
        %1358 = vmatprep.subr.bf16.mxu0 0
        %1359 = vmatpush2.bf16.msra.mxu0 0
        %1360 = vmatprep.subr.bf16.mxu0 0
        %1361 = vmatpush2.bf16.msra.mxu0 0
        %1362 = vmatprep.mubr.bf16.mxu0 0
        %1363 = vmatmul.mubr.bf16.gmra.mxu0 %v1319
        %v1364 = vpop.f32.mrf.mxu0
        %v1365 = vadd.f32 %v1228, %v1364
        %v1366 = vpop.f32.mrf.mxu0
        %v1367 = vpop.f32.mrf.mxu0
        %v1368 = vadd.f32 %v1233, %v1367
        %v1369 = vpop.f32.mrf.mxu0
        %1370 = vmatprep.mubr.bf16.mxu0 0
        %1371 = vmatmul.mubr.bf16.gmra.mxu0 %v1322
        %v1372 = vpop.f32.mrf.mxu0
        %v1373 = vadd.f32 %v1238, %v1372
        %v1374 = vpop.f32.mrf.mxu0
        %v1375 = vpop.f32.mrf.mxu0
        %v1376 = vadd.f32 %v1243, %v1375
        %v1377 = vpop.f32.mrf.mxu0
        %1378 = vmatprep.mubr.bf16.mxu0 0
        %1379 = vmatmul.mubr.bf16.gmra.mxu0 %v1325
        %v1380 = vpop.f32.mrf.mxu0
        %v1381 = vadd.f32 %v1248, %v1380
        %v1382 = vpop.f32.mrf.mxu0
        %v1383 = vpop.f32.mrf.mxu0
        %v1384 = vadd.f32 %v1253, %v1383
        %v1385 = vpop.f32.mrf.mxu0
        %1386 = vmatprep.mubr.bf16.mxu0 0
        %1387 = vmatmul.mubr.bf16.gmra.mxu0 %v1328
        %v1388 = vpop.f32.mrf.mxu0
        %v1389 = vadd.f32 %v1258, %v1388
        %v1390 = vpop.f32.mrf.mxu0
        %v1391 = vpop.f32.mrf.mxu0
        %v1392 = vadd.f32 %v1263, %v1391
        %v1393 = vpop.f32.mrf.mxu0
        %1394 = vdwg.mxu0
        %v1395 = vtanh.pop %v1365
        %v1396 = vtanh.pop %v1368
        %v1397 = vtanh.pop %v1373
        %v1398 = vtanh.pop %v1376
        %v1399 = vsub.f32 0.0, %v1381
        %v1400 = vsub.f32 0.0, %v1384
        %v1401 = vsub.f32 0.0, %v1389
        %v1402 = vsub.f32 0.0, %v1392
        %v1403 = vmul.f32 %v1399, 1.442695
        %v1404 = vpow.pop %v1403
        %v1405 = vmul.f32 %v1400, 1.442695
        %v1406 = vpow.pop %v1405
        %v1407 = vmul.f32 %v1401, 1.442695
        %v1408 = vpow.pop %v1407
        %v1409 = vmul.f32 %v1402, 1.442695
        %v1410 = vpow.pop %v1409
        %v1411 = vadd.f32 %v1404, 1.0
        %v1412 = vadd.f32 %v1406, 1.0
        %v1413 = vadd.f32 %v1408, 1.0
        %v1414 = vadd.f32 %v1410, 1.0
        %v1415 = vrcp.pop %v1411
        %v1416 = vrcp.pop %v1412
        %v1417 = vrcp.pop %v1413
        %v1418 = vrcp.pop %v1414
        %v1419 = vmul.f32 %v1395, %v1415
        %v1420 = vmul.f32 %v1396, %v1416
        %v1421 = vmul.f32 %v1397, %v1417
        %v1422 = vmul.f32 %v1398, %v1418
        %v1423 = vpack.c.bf16 %v1420, %v1419
        %v1424 = vpack.c.bf16 %v1422, %v1421
        %s1425 = scalar_lea.vmem %s4, 64
        %v1426 = vld [vmem:[%s1425] sm:$0xf]
        %v1427 = vld [vmem:[%s1425 + $0x4] sm:$0xf]
        %v1428 = vld [vmem:[%s1425 + $0x8] sm:$0xf]
        %v1429 = vld [vmem:[%s1425 + $0xc] sm:$0xf]
        %v1430 = vld [vmem:[%s1425 + $0x10] sm:$0xf]
        %v1431 = vld [vmem:[%s1425 + $0x14] sm:$0xf]
        %v1432 = vld [vmem:[%s1425 + $0x18] sm:$0xf]
        %v1433 = vld [vmem:[%s1425 + $0x1c] sm:$0xf]
        %s1434 = scalar_lea.vmem %s5, 128
        %v1435 = vld [vmem:[%s1434] sm:$0xff]
        %v1436 = vld [vmem:[%s1434 + $0x8] sm:$0xff]
        %v1437 = vld [vmem:[%s1434 + $0x10] sm:$0xff]
        %v1438 = vld [vmem:[%s1434 + $0x18] sm:$0xff]
        %v1439 = vld [vmem:[%s1434 + $0x20] sm:$0xff]
        %v1440 = vld [vmem:[%s1434 + $0x28] sm:$0xff]
        %v1441 = vld [vmem:[%s1434 + $0x30] sm:$0xff]
        %v1442 = vld [vmem:[%s1434 + $0x38] sm:$0xff]
        %1444 = vset.pattern.permute.xlu0 0
        %1445 = vperm.xlu0 %1444, %v1435
        %v1446 = vpop.permute.xlu0 %1445
        %1449 = vset.pattern.permute.xlu0 0
        %1450 = vperm.xlu0 %1449, %v1436
        %v1451 = vpop.permute.xlu0 %1450
        %1454 = vset.pattern.permute.xlu0 0
        %1455 = vperm.xlu0 %1454, %v1437
        %v1456 = vpop.permute.xlu0 %1455
        %1459 = vset.pattern.permute.xlu0 0
        %1460 = vperm.xlu0 %1459, %v1438
        %v1461 = vpop.permute.xlu0 %1460
        %1464 = vset.pattern.permute.xlu0 0
        %1465 = vperm.xlu0 %1464, %v1439
        %v1466 = vpop.permute.xlu0 %1465
        %1468 = vset.pattern.permute.xlu0 0
        %1469 = vperm.xlu0 %1468, %v1440
        %v1470 = vpop.permute.xlu0 %1469
        %1472 = vset.pattern.permute.xlu0 0
        %1473 = vperm.xlu0 %1472, %v1441
        %v1474 = vpop.permute.xlu0 %1473
        %1476 = vset.pattern.permute.xlu0 0
        %1477 = vperm.xlu0 %1476, %v1442
        %v1478 = vpop.permute.xlu0 %1477
        %v1487 = vunpack.c.l.b16 %v1426
        %v1488 = vunpack.c.l.b16 %v1427
        %v1489 = vunpack.c.l.b16 %v1428
        %v1490 = vunpack.c.l.b16 %v1429
        %v1491 = vunpack.c.l.b16 %v1430
        %v1492 = vunpack.c.l.b16 %v1431
        %v1493 = vunpack.c.l.b16 %v1432
        %v1494 = vunpack.c.l.b16 %v1433
        %v1495 = vpack.c.b16 %v1488, %v1487
        %v1496 = vpack.c.b16 %v1490, %v1489
        %v1497 = vpack.c.b16 %v1492, %v1491
        %v1498 = vpack.c.b16 %v1494, %v1493
        %v1500 = vsel %vm628, %v1495, 0
        %v1503 = vsel %vm628, %v1496, 0
        %v1506 = vsel %vm628, %v1497, 0
        %v1509 = vsel %vm628, %v1498, 0
        %1511 = vmatprep.subr.bf16.mxu0 0
        %1512 = vmatpush1.bf16.msra.mxu0 0
        %1513 = vmatprep.subr.bf16.mxu0 0
        %1514 = vmatpush1.bf16.msra.mxu0 0
        %1515 = vmatprep.subr.bf16.mxu0 0
        %1516 = vmatpush1.bf16.msra.mxu0 0
        %1517 = vmatprep.subr.bf16.mxu0 0
        %1518 = vmatpush1.bf16.msra.mxu0 0
        %1519 = vmatprep.subr.bf16.mxu0 0
        %1520 = vmatpush1.bf16.msra.mxu0 0
        %1521 = vmatprep.subr.bf16.mxu0 0
        %1522 = vmatpush1.bf16.msra.mxu0 0
        %1523 = vmatprep.subr.bf16.mxu0 0
        %1524 = vmatpush1.bf16.msra.mxu0 %v1424
        %1525 = vmatprep.subr.bf16.mxu0 0
        %1526 = vmatpush1.bf16.msra.mxu0 %v1423
        %1527 = vmatprep.subr.bf16.mxu0 0
        %1528 = vmatpush2.bf16.msra.mxu0 0
        %1529 = vmatprep.subr.bf16.mxu0 0
        %1530 = vmatpush2.bf16.msra.mxu0 0
        %1531 = vmatprep.subr.bf16.mxu0 0
        %1532 = vmatpush2.bf16.msra.mxu0 0
        %1533 = vmatprep.subr.bf16.mxu0 0
        %1534 = vmatpush2.bf16.msra.mxu0 0
        %1535 = vmatprep.subr.bf16.mxu0 0
        %1536 = vmatpush2.bf16.msra.mxu0 0
        %1537 = vmatprep.subr.bf16.mxu0 0
        %1538 = vmatpush2.bf16.msra.mxu0 0
        %1539 = vmatprep.subr.bf16.mxu0 0
        %1540 = vmatpush2.bf16.msra.mxu0 0
        %1541 = vmatprep.subr.bf16.mxu0 0
        %1542 = vmatpush2.bf16.msra.mxu0 0
        %1543 = vmatprep.mubr.bf16.mxu0 0
        %1544 = vmatmul.mubr.bf16.gmra.mxu0 %v1500
        %v1545 = vpop.f32.mrf.mxu0
        %v1546 = vadd.f32 %v1446, %v1545
        %v1547 = vpop.f32.mrf.mxu0
        %v1548 = vpop.f32.mrf.mxu0
        %v1549 = vadd.f32 %v1451, %v1548
        %v1550 = vpop.f32.mrf.mxu0
        %1551 = vmatprep.mubr.bf16.mxu0 0
        %1552 = vmatmul.mubr.bf16.gmra.mxu0 %v1503
        %v1553 = vpop.f32.mrf.mxu0
        %v1554 = vadd.f32 %v1456, %v1553
        %v1555 = vpop.f32.mrf.mxu0
        %v1556 = vpop.f32.mrf.mxu0
        %v1557 = vadd.f32 %v1461, %v1556
        %v1558 = vpop.f32.mrf.mxu0
        %1559 = vmatprep.mubr.bf16.mxu0 0
        %1560 = vmatmul.mubr.bf16.gmra.mxu0 %v1506
        %v1561 = vpop.f32.mrf.mxu0
        %v1562 = vpop.f32.mrf.mxu0
        %v1563 = vpop.f32.mrf.mxu0
        %v1564 = vpop.f32.mrf.mxu0
        %1565 = vmatprep.mubr.bf16.mxu0 0
        %1566 = vmatmul.mubr.bf16.gmra.mxu0 %v1509
        %v1567 = vpop.f32.mrf.mxu0
        %v1568 = vpop.f32.mrf.mxu0
        %v1569 = vpop.f32.mrf.mxu0
        %v1570 = vpop.f32.mrf.mxu0
        %1571 = vdwg.mxu0
        %v1572 = vadd.f32 %v1158, %v1546
        %v1573 = vadd.f32 %v1159, %v1549
        %v1574 = vadd.f32 %v1160, %v1554
        %v1575 = vadd.f32 %v1161, %v1557
        %v1576 = vmul.f32 %v1572, %v714
        %v1577 = vmul.f32 %v1573, %v714
        %v1578 = vmul.f32 %v1574, %v714
        %v1579 = vmul.f32 %v1575, %v714
        %1580 = vst [vmem:[%s255] sm:$0xff] %v1576
        %1581 = vst [vmem:[%s255 + $0x8] sm:$0xff] %v1577
        %1582 = vst [vmem:[%s255 + $0x10] sm:$0xff] %v1578
        %1583 = vst [vmem:[%s255 + $0x18] sm:$0xff] %v1579
        %s1584 = sand.u32 %s164, 1
        %s1585 = scalar_lea.sflag [#allocation4], %s1584
        %s1586 = sand.u32 %s164, 1
        %s1587 = smul.addr %s1586, 32
        %s1588 = scalar_lea.vmem [#allocation3], %s1587
        // Predicated region
        $region45: #{wn_forward.1} parent=43 // pred_check
          %p1589 = pneg %p174
        $region46: #{wn_forward.1} parent=43 // pred_check_branch
          %1591 = sbr.rel (%p1589) target = $region48
        $region47: #{wn_forward.1} parent=43 // pred_region
          %s1593 = ssub.s32 512, 512
          %1594 = vsyncadd %s1585, %s1593
          %s1595 = smul.addr %s20, 4
          %s1596 = smul.addr %s1595, 128
          %s1597 = scalar_lea.hbm %s6, %s1596
          %s1598 = sshll.u32 %s1588, 4
          %s1599 = int_to_ptr.vmem [resolvable:$true] %s1598
          %1604 = dma.vmem_to_hbm [thread:$0]  %s1599, 512, %s1597, %s1585, 128, 128, 8
        $region48: #{wn_forward.1} parent=43 // pred_fallthru
          _
      $region44: #{wn_forward.1} parent=5 // pred_fallthru
        _
      %p1605 = scmp.le.s32.totalorder 2, %s15
      // Predicated region
      $region49: #{wn_forward.1} parent=5 // pred_check
        %p1606 = pneg %p1605
      $region50: #{wn_forward.1} parent=5 // pred_check_branch
        %1608 = sbr.rel (%p1606) target = $region52
      $region51: #{wn_forward.1} parent=5 // pred_region
        %s1609 = ssub.s32 %s15, 2
        // Predicated region
        $region53: #{wn_forward.1} parent=51 // pred_check
          %p1610 = pneg %p180
        $region54: #{wn_forward.1} parent=51 // pred_check_branch
          %1612 = sbr.rel (%p1610) target = $region56
        $region55: #{wn_forward.1} parent=51 // pred_region
          %s1613 = sand.u32 %s165, 1
          %s1614 = scalar_lea.sflag [#allocation4], %s1613
          %s1615 = sand.u32 %s165, 1
          %s1616 = smul.addr %s1615, 32
          %s1617 = scalar_lea.vmem [#allocation3], %s1616
          %1618 = dma.done %s1614, 512
        $region56: #{wn_forward.1} parent=51 // pred_fallthru
          _
      $region52: #{wn_forward.1} parent=5 // pred_fallthru
        _
    $region6: #{wn_forward.1} parent=1 // loop_footer
      %s19 = sadd.s32 1, %s15
    $region7: #{wn_forward.1} parent=1 // loop_footer_branch
      %14 = sbr.rel target = $region3
    $region8: #{wn_forward.1} parent=1 // loop_exit
      _
    %1619 = vsyncpa [#allocation4], 1
    %s1620 = scalar_lea.sflag [#allocation4], 1
    %1621 = vsyncpa %s1620, 1

</llo_original>
